<compile_context>
chip_gen: v7x
topology: tpu7x:2x2x1
jax: 0.10.0
libtpu: 0.0.40
codegen_flags: <defaults>
</compile_context>

<pallas_src>
import functools

import numpy as np
import jax
import jax.numpy as jnp
from jax.experimental import pallas as pl
from jax.experimental.pallas import tpu as pltpu

F32 = jnp.float32


# ----------------------------------------------------------------------------
# Fused kernel: geometry encoder + feature encoder + decoder (TB batches/step)
# ----------------------------------------------------------------------------
def grasp_energy_kernel(k_ref, ht_ref, z_ref, pts_ref, freqs_ref,
                        slab1_ref, slab2_ref, slab3_ref, e_ref,
                        *, TB, P, NF, LAT, HID, FPSI, HDEC, offs):
    o_w1p, o_wkz, o_b1, o_w2, o_b2 = offs["slab1"]
    o_w3, o_b3 = offs["slab2"]
    o_wd1, o_bd1, o_wd2, o_bd2 = offs["slab3"]
    KZ = 2 * NF + LAT
    D = P * FPSI

    # --- geometry_encoder: transform canonical points by each grasp pose (VPU) ---
    # pts holds homogeneous points (P,4); ht holds H^T, so p4 row = [R p + t, 1].
    # The homogeneous column is killed later by a zero 4th row in w1p.
    pts = pts_ref[...]                                         # (P, 4)
    ht = ht_ref[...]                                           # (TB, 4, 4)
    p4_blocks = []
    for b in range(TB):                                        # TB small, unrolled
        p4_b = pts[:, 0:1] * ht[b, 0:1, :]
        for i in range(1, 4):
            p4_b = p4_b + pts[:, i:i + 1] * ht[b, i:i + 1, :]  # (P,1)*(1,4) -> (P,4)
        p4_blocks.append(p4_b)
    p4 = jnp.concatenate(p4_blocks, axis=0)                    # (TB*P, 4)

    # --- hoisted per-batch layer-1 terms (constant across the P points) ---
    kcol = k_ref[0]                                            # (TB, 1) diffusion time
    ang = (2.0 * np.pi) * kcol * freqs_ref[...]                # (TB, NF)
    emb_z = jnp.concatenate([jnp.sin(ang), jnp.cos(ang), z_ref[0]], axis=-1)  # (TB, KZ)
    row = (jnp.dot(emb_z, slab1_ref[o_wkz:o_wkz + KZ, :], preferred_element_type=F32)
           + slab1_ref[o_b1:o_b1 + 1, :])                      # (TB, HID)
    # broadcast each batch's row across that batch's P points
    row_exp = jnp.concatenate(
        [jnp.broadcast_to(row[b:b + 1, :], (P, HID)) for b in range(TB)], axis=0)

    # --- feature_encoder: 3-layer point MLP, one matmul chain with M = TB*P ---
    h = jnp.maximum(
        jnp.dot(p4, slab1_ref[o_w1p:o_w1p + 4, :], preferred_element_type=F32)
        + row_exp, 0.0)
    h = jnp.maximum(
        jnp.dot(h, slab1_ref[o_w2:o_w2 + HID, :], preferred_element_type=F32)
        + slab1_ref[o_b2:o_b2 + 1, :], 0.0)
    psi = (jnp.dot(h, slab2_ref[o_w3:o_w3 + HID, :], preferred_element_type=F32)
           + slab2_ref[o_b3:o_b3 + 1, :])                      # (TB*P, FPSI)

    # --- decoder: per-batch in-register flatten (P,FPSI)->(1,P*FPSI), 2-layer MLP ---
    col = jax.lax.broadcasted_iota(jnp.int32, (P, D), 1)
    rowi = jax.lax.broadcasted_iota(jnp.int32, (P, D), 0)
    diff = col - rowi * FPSI
    mask = jnp.logical_and(diff >= 0, diff < FPSI)
    flats = []
    for b in range(TB):
        psi_b = psi[b * P:(b + 1) * P, :]                      # (P, FPSI) static slice
        psi_t = jnp.concatenate([psi_b] * P, axis=-1)          # (P, P*FPSI)
        flats.append(jnp.sum(jnp.where(mask, psi_t, 0.0), axis=0, keepdims=True))
    psi_flat = jnp.concatenate(flats, axis=0)                  # (TB, P*FPSI)
    # TODO(synk): for realistic point counts (P >~ 16) replace this O(P^2*FPSI)
    # flatten with strided stores into a VMEM scratch or per-point partial matmuls.

    hd = jnp.maximum(
        jnp.dot(psi_flat, slab3_ref[o_wd1:o_wd1 + D, :], preferred_element_type=F32)
        + slab3_ref[o_bd1:o_bd1 + 1, :], 0.0)                  # (TB, HDEC)
    wd2 = slab3_ref[o_wd2:o_wd2 + 1, :]                        # (1, HDEC)
    bd2 = slab3_ref[o_bd2:o_bd2 + 1, :][:, :1]                 # (1, 1)
    # final (HDEC,1) layer as VPU multiply + lane reduction (no degenerate matmul)
    e = jnp.sum(hd * wd2, axis=-1, keepdims=True) + bd2        # (TB, 1)
    e_ref[0] = e                                               # single store per step


def run_grasp_energy(k, Ht, z, points_h, freqs2d, slab1, slab2, slab3, offs,
                     *, NF, LAT, HID, FPSI, HDEC, tile_batch=None):
    B = Ht.shape[0]
    P = points_h.shape[0]

    # Batch tiling: fold TB batch elements per grid step to amortize the fixed
    # per-step overhead and fill MXU sublanes (M = TB*P), while keeping the
    # parallel grid at >= 2 steps (when B >= 2) so v7x's two TensorCores split it.
    TB = tile_batch if tile_batch is not None else min(8, max(1, (B + 1) // 2))
    steps = pl.cdiv(B, TB)
    Bp = steps * TB
    pad = Bp - B
    if pad:
        Ht = jnp.concatenate([Ht, jnp.zeros((pad, 4, 4), F32)], axis=0)
        z = jnp.concatenate([z, jnp.zeros((pad, LAT), F32)], axis=0)
        k = jnp.concatenate([k, jnp.zeros((pad,), F32)], axis=0)
    k3 = k.reshape(steps, TB, 1)
    z3 = z.reshape(steps, TB, LAT)

    kernel = functools.partial(
        grasp_energy_kernel, TB=TB, P=P, NF=NF, LAT=LAT,
        HID=HID, FPSI=FPSI, HDEC=HDEC, offs=offs)

    e3 = pl.pallas_call(
        kernel,
        out_shape=jax.ShapeDtypeStruct((steps, TB, 1), F32),
        grid=(steps,),
        in_specs=[
            pl.BlockSpec((1, TB, 1),   lambda g: (g, 0, 0)),   # diffusion time k
            pl.BlockSpec((TB, 4, 4),   lambda g: (g, 0, 0)),   # H^T per batch element
            pl.BlockSpec((1, TB, LAT), lambda g: (g, 0, 0)),   # latent z
            pl.BlockSpec((P, 4),       lambda g: (0, 0)),      # homogeneous points
            pl.BlockSpec((1, NF),      lambda g: (0, 0)),      # fourier freqs
            pl.BlockSpec(slab1.shape,  lambda g: (0, 0)),      # w1p|Wkz|b1|W2|b2 slab
            pl.BlockSpec(slab2.shape,  lambda g: (0, 0)),      # W3|b3 slab
            pl.BlockSpec(slab3.shape,  lambda g: (0, 0)),      # Wd1|bd1|wd2|bd2 slab
        ],
        out_specs=pl.BlockSpec((1, TB, 1), lambda g: (g, 0, 0)),
        compiler_params=pltpu.CompilerParams(dimension_semantics=("parallel",)),
    )(k3, Ht, z3, points_h, freqs2d, slab1, slab2, slab3)
    return e3.reshape(Bp, 1)[:B]


# ----------------------------------------------------------------------------
# Weight-slab packing (each section starts on an 8-sublane boundary)
# ----------------------------------------------------------------------------
def _pack_rows(sections, width):
    parts, offsets, cur = [], [], 0
    for sec in sections:
        sec = jnp.asarray(sec, F32)
        if sec.ndim == 1:
            sec = sec[None, :]
        if sec.shape[1] < width:
            sec = jnp.concatenate(
                [sec, jnp.zeros((sec.shape[0], width - sec.shape[1]), F32)], axis=1)
        start = ((cur + 7) // 8) * 8
        if start > cur:
            parts.append(jnp.zeros((start - cur, width), F32))
        parts.append(sec)
        offsets.append(start)
        cur = start + sec.shape[0]
    return jnp.concatenate(parts, axis=0), offsets


# ----------------------------------------------------------------------------
# Module wrapper mirroring GraspDiffusionFields
# ----------------------------------------------------------------------------
class GraspDiffusionFieldsPallas:
    def __init__(self, params, points):
        self.params = params
        self.points = points                               # registered buffer (P, 3)
        P = points.shape[0]
        self.points_h = jnp.concatenate(
            [points, jnp.ones((P, 1), F32)], axis=-1)      # (P, 4) homogeneous
        self.z = None

    def set_latent(self, O, batch=1):
        # vision_encoder: tiny PointNet-style encoder (plain-JAX glue; not part
        # of the forward() hot path).
        p = self.params
        O_sq = jnp.squeeze(O, axis=1)                      # (B, N_obs, 3)
        h = jax.nn.relu(O_sq @ p["Wv1"] + p["bv1"])        # (B, N_obs, HV)
        g = jnp.max(h, axis=1)                             # (B, HV)
        z = g @ p["Wv2"] + p["bv2"]                        # (B, LAT)
        z = jnp.repeat(z[:, None, :], batch, axis=1).reshape(-1, z.shape[-1])
        self.z = z

    def forward(self, H, k):
        p = self.params
        Ht = jnp.swapaxes(H, -1, -2)                       # (B, 4, 4)
        return run_grasp_energy(
            k.astype(F32), Ht, self.z, self.points_h,
            p["freqs2d"], p["slab1"], p["slab2"], p["slab3"], p["slab_offsets"],
            NF=p["freqs"].shape[0], LAT=self.z.shape[-1],
            HID=p["W2"].shape[0], FPSI=p["W3"].shape[1], HDEC=p["Wd1"].shape[1])

    # TODO(synk): compute_sdf (per-point psi[...,0] with random per-point k) is not
    # implemented; forward() is the hot path covered by the fused kernel.


# ----------------------------------------------------------------------------
# Pure-JAX reference (same math, used for validation)
# ----------------------------------------------------------------------------
def reference_forward(params, points, z, H, k):
    R = H[:, :3, :3]
    t = H[:, :3, 3]
    p = jnp.einsum("bij,nj->bni", R, points) + t[:, None, :]          # (B, P, 3)

    ang = 2.0 * np.pi * k[:, None] * params["freqs"][None, :]         # (B, NF)
    kemb = jnp.concatenate([jnp.sin(ang), jnp.cos(ang)], axis=-1)     # (B, 2NF)

    B, P, _ = p.shape
    kemb_e = jnp.broadcast_to(kemb[:, None, :], (B, P, kemb.shape[-1]))
    z_e = jnp.broadcast_to(z[:, None, :], (B, P, z.shape[-1]))
    x = jnp.concatenate([p, kemb_e, z_e], axis=-1)

    h = jax.nn.relu(x @ params["W1"] + params["b1"])
    h = jax.nn.relu(h @ params["W2"] + params["b2"])
    psi = h @ params["W3"] + params["b3"]
    pf = psi.reshape(B, -1)
    hd = jax.nn.relu(pf @ params["Wd1"] + params["bd1"])
    return hd @ params["Wd2"] + params["bd2"]


# ----------------------------------------------------------------------------
# Deterministic parameter init + example run
# ----------------------------------------------------------------------------
def init_params(key, *, P, NF, LAT, HID, FPSI, HDEC, HV):
    ks = jax.random.split(key, 16)
    d_in = 3 + 2 * NF + LAT

    def lin(k, fan_in, fan_out):
        return jax.random.normal(k, (fan_in, fan_out), F32) / np.sqrt(fan_in)

    params = {
        # feature encoder
        "freqs": jax.random.normal(ks[0], (NF,), F32),
        "W1": lin(ks[1], d_in, HID), "b1": 0.01 * jax.random.normal(ks[2], (HID,), F32),
        "W2": lin(ks[3], HID, HID),  "b2": 0.01 * jax.random.normal(ks[4], (HID,), F32),
        "W3": lin(ks[5], HID, FPSI), "b3": 0.01 * jax.random.normal(ks[6], (FPSI,), F32),
        # decoder
        "Wd1": lin(ks[7], P * FPSI, HDEC), "bd1": 0.01 * jax.random.normal(ks[8], (HDEC,), F32),
        "Wd2": lin(ks[9], HDEC, 1),        "bd2": 0.01 * jax.random.normal(ks[10], (1,), F32),
        # vision encoder (for set_latent only)
        "Wv1": lin(ks[11], 3, HV),  "bv1": 0.01 * jax.random.normal(ks[12], (HV,), F32),
        "Wv2": lin(ks[13], HV, LAT), "bv2": 0.01 * jax.random.normal(ks[14], (LAT,), F32),
    }

    # kernel-side packed slabs (split over the [points | sin|cos | z] feature layout)
    W1 = params["W1"]
    w1p = jnp.concatenate([W1[:3], jnp.zeros((1, HID), F32)], axis=0)   # (4, HID)
    wkz = W1[3:]                                                        # (2NF+LAT, HID)
    slab1, offs1 = _pack_rows([w1p, wkz, params["b1"], params["W2"], params["b2"]], HID)
    slab2, offs2 = _pack_rows([params["W3"], params["b3"]], FPSI)
    slab3, offs3 = _pack_rows(
        [params["Wd1"], params["bd1"], params["Wd2"].T, params["bd2"]], HDEC)
    params["slab1"], params["slab2"], params["slab3"] = slab1, slab2, slab3
    params["slab_offsets"] = {"slab1": offs1, "slab2": offs2, "slab3": offs3}
    params["freqs2d"] = params["freqs"][None, :]                        # (1, NF)
    return params


if __name__ == "__main__":
    # B=5 exercises batch tiling (TB=3, 2 parallel grid steps) and the padding path.
    B, P, N_OBS = 5, 8, 16
    NF, LAT, HID, FPSI, HDEC, HV = 8, 16, 32, 8, 32, 32

    root = jax.random.PRNGKey(0)
    k_params, k_pts, k_obs, k_rot, k_trn, k_time = jax.random.split(root, 6)

    params = init_params(k_params, P=P, NF=NF, LAT=LAT, HID=HID,
                         FPSI=FPSI, HDEC=HDEC, HV=HV)

    # canonical gripper points buffer
    points = jax.random.uniform(k_pts, (P, 3), F32, minval=-0.5, maxval=0.5)

    # observation point cloud O: (B, 1, N_obs, 3) and grasp poses H: (B, 4, 4)
    O = jax.random.normal(k_obs, (B, 1, N_OBS, 3), F32)
    Rm = jax.random.normal(k_rot, (B, 3, 3), F32)
    Rq, _ = jnp.linalg.qr(Rm)                                  # rotation-like 3x3
    t = 0.3 * jax.random.normal(k_trn, (B, 3), F32)
    H = jnp.zeros((B, 4, 4), F32)
    H = H.at[:, :3, :3].set(Rq)
    H = H.at[:, :3, 3].set(t)
    H = H.at[:, 3, 3].set(1.0)
    kdiff = jax.random.uniform(k_time, (B,), F32)              # diffusion time k

    model = GraspDiffusionFieldsPallas(params, points)
    model.set_latent(O, batch=1)

    e = model.forward(H, kdiff)
    e = jax.block_until_ready(e)

    e_ref = reference_forward(params, points, model.z, H, kdiff)
    e_ref = jax.block_until_ready(e_ref)

    assert e.shape == (B, 1)
    np.testing.assert_allclose(np.asarray(e), np.asarray(e_ref), rtol=1e-3, atol=1e-3)
    print("KERNEL_OK")
</pallas_src>

<mosaic_0001>
module attributes {stable_mosaic.version = 11 : i64} {
  func.func @grasp_energy_kernel(%arg0: i32, %arg1: memref<1x3x1xf32, #tpu.memory_space<vmem>>, %arg2: memref<3x4x4xf32, #tpu.memory_space<vmem>>, %arg3: memref<1x3x16xf32, #tpu.memory_space<vmem>>, %arg4: memref<8x4xf32, #tpu.memory_space<vmem>>, %arg5: memref<1x8xf32, #tpu.memory_space<vmem>>, %arg6: memref<81x32xf32, #tpu.memory_space<vmem>>, %arg7: memref<33x8xf32, #tpu.memory_space<vmem>>, %arg8: memref<81x32xf32, #tpu.memory_space<vmem>>, %arg9: memref<1x3x1xf32, #tpu.memory_space<vmem>>) attributes {dimension_semantics = [#tpu.dimension_semantics<parallel>], iteration_bounds = array<i64: 2>, scalar_prefetch = 0 : i64, scratch_operands = 0 : i64, tpu.core_type = #tpu.core_type<tc>, window_params = [{transform_indices = @transform_0, window_bounds = array<i64: 1, 3, 1>}, {transform_indices = @transform_1, window_bounds = array<i64: 3, 4, 4>}, {transform_indices = @transform_2, window_bounds = array<i64: 1, 3, 16>}, {pipeline_mode = #tpu.pipeline_mode<synchronous>, transform_indices = @transform_3, window_bounds = array<i64: 8, 4>}, {pipeline_mode = #tpu.pipeline_mode<synchronous>, transform_indices = @transform_4, window_bounds = array<i64: 1, 8>}, {pipeline_mode = #tpu.pipeline_mode<synchronous>, transform_indices = @transform_5, window_bounds = array<i64: 81, 32>}, {pipeline_mode = #tpu.pipeline_mode<synchronous>, transform_indices = @transform_6, window_bounds = array<i64: 33, 8>}, {pipeline_mode = #tpu.pipeline_mode<synchronous>, transform_indices = @transform_7, window_bounds = array<i64: 81, 32>}, {transform_indices = @transform_8, window_bounds = array<i64: 1, 3, 1>}]} {
    %c0 = arith.constant 0 : index
    %c0_0 = arith.constant 0 : index
    %0 = vector.load %arg4[%c0, %c0_0] : memref<8x4xf32, #tpu.memory_space<vmem>>, vector<8x4xf32>
    %c0_1 = arith.constant 0 : index
    %c0_2 = arith.constant 0 : index
    %c0_3 = arith.constant 0 : index
    %1 = vector.load %arg2[%c0_1, %c0_2, %c0_3] : memref<3x4x4xf32, #tpu.memory_space<vmem>>, vector<3x4x4xf32>
    %2 = vector.extract_strided_slice %0 {offsets = [0, 0], sizes = [8, 1], strides = [1, 1]} : vector<8x4xf32> to vector<8x1xf32>
    %3 = vector.extract_strided_slice %1 {offsets = [0, 0, 0], sizes = [1, 1, 4], strides = [1, 1, 1]} : vector<3x4x4xf32> to vector<1x1x4xf32>
    %4 = vector.shape_cast %3 : vector<1x1x4xf32> to vector<1x4xf32>
    %5 = vector.broadcast %2 : vector<8x1xf32> to vector<8x4xf32>
    %6 = vector.broadcast %4 : vector<1x4xf32> to vector<8x4xf32>
    %7 = arith.mulf %5, %6 : vector<8x4xf32>
    %8 = vector.extract_strided_slice %0 {offsets = [0, 1], sizes = [8, 1], strides = [1, 1]} : vector<8x4xf32> to vector<8x1xf32>
    %9 = vector.extract_strided_slice %1 {offsets = [0, 1, 0], sizes = [1, 1, 4], strides = [1, 1, 1]} : vector<3x4x4xf32> to vector<1x1x4xf32>
    %10 = vector.shape_cast %9 : vector<1x1x4xf32> to vector<1x4xf32>
    %11 = vector.broadcast %8 : vector<8x1xf32> to vector<8x4xf32>
    %12 = vector.broadcast %10 : vector<1x4xf32> to vector<8x4xf32>
    %13 = arith.mulf %11, %12 : vector<8x4xf32>
    %14 = arith.addf %7, %13 : vector<8x4xf32>
    %15 = vector.extract_strided_slice %0 {offsets = [0, 2], sizes = [8, 1], strides = [1, 1]} : vector<8x4xf32> to vector<8x1xf32>
    %16 = vector.extract_strided_slice %1 {offsets = [0, 2, 0], sizes = [1, 1, 4], strides = [1, 1, 1]} : vector<3x4x4xf32> to vector<1x1x4xf32>
    %17 = vector.shape_cast %16 : vector<1x1x4xf32> to vector<1x4xf32>
    %18 = vector.broadcast %15 : vector<8x1xf32> to vector<8x4xf32>
    %19 = vector.broadcast %17 : vector<1x4xf32> to vector<8x4xf32>
    %20 = arith.mulf %18, %19 : vector<8x4xf32>
    %21 = arith.addf %14, %20 : vector<8x4xf32>
    %22 = vector.extract_strided_slice %0 {offsets = [0, 3], sizes = [8, 1], strides = [1, 1]} : vector<8x4xf32> to vector<8x1xf32>
    %23 = vector.extract_strided_slice %1 {offsets = [0, 3, 0], sizes = [1, 1, 4], strides = [1, 1, 1]} : vector<3x4x4xf32> to vector<1x1x4xf32>
    %24 = vector.shape_cast %23 : vector<1x1x4xf32> to vector<1x4xf32>
    %25 = vector.broadcast %22 : vector<8x1xf32> to vector<8x4xf32>
    %26 = vector.broadcast %24 : vector<1x4xf32> to vector<8x4xf32>
    %27 = arith.mulf %25, %26 : vector<8x4xf32>
    %28 = arith.addf %21, %27 : vector<8x4xf32>
    %29 = vector.extract_strided_slice %0 {offsets = [0, 0], sizes = [8, 1], strides = [1, 1]} : vector<8x4xf32> to vector<8x1xf32>
    %30 = vector.extract_strided_slice %1 {offsets = [1, 0, 0], sizes = [1, 1, 4], strides = [1, 1, 1]} : vector<3x4x4xf32> to vector<1x1x4xf32>
    %31 = vector.shape_cast %30 : vector<1x1x4xf32> to vector<1x4xf32>
    %32 = vector.broadcast %29 : vector<8x1xf32> to vector<8x4xf32>
    %33 = vector.broadcast %31 : vector<1x4xf32> to vector<8x4xf32>
    %34 = arith.mulf %32, %33 : vector<8x4xf32>
    %35 = vector.extract_strided_slice %0 {offsets = [0, 1], sizes = [8, 1], strides = [1, 1]} : vector<8x4xf32> to vector<8x1xf32>
    %36 = vector.extract_strided_slice %1 {offsets = [1, 1, 0], sizes = [1, 1, 4], strides = [1, 1, 1]} : vector<3x4x4xf32> to vector<1x1x4xf32>
    %37 = vector.shape_cast %36 : vector<1x1x4xf32> to vector<1x4xf32>
    %38 = vector.broadcast %35 : vector<8x1xf32> to vector<8x4xf32>
    %39 = vector.broadcast %37 : vector<1x4xf32> to vector<8x4xf32>
    %40 = arith.mulf %38, %39 : vector<8x4xf32>
    %41 = arith.addf %34, %40 : vector<8x4xf32>
    %42 = vector.extract_strided_slice %0 {offsets = [0, 2], sizes = [8, 1], strides = [1, 1]} : vector<8x4xf32> to vector<8x1xf32>
    %43 = vector.extract_strided_slice %1 {offsets = [1, 2, 0], sizes = [1, 1, 4], strides = [1, 1, 1]} : vector<3x4x4xf32> to vector<1x1x4xf32>
    %44 = vector.shape_cast %43 : vector<1x1x4xf32> to vector<1x4xf32>
    %45 = vector.broadcast %42 : vector<8x1xf32> to vector<8x4xf32>
    %46 = vector.broadcast %44 : vector<1x4xf32> to vector<8x4xf32>
    %47 = arith.mulf %45, %46 : vector<8x4xf32>
    %48 = arith.addf %41, %47 : vector<8x4xf32>
    %49 = vector.extract_strided_slice %0 {offsets = [0, 3], sizes = [8, 1], strides = [1, 1]} : vector<8x4xf32> to vector<8x1xf32>
    %50 = vector.extract_strided_slice %1 {offsets = [1, 3, 0], sizes = [1, 1, 4], strides = [1, 1, 1]} : vector<3x4x4xf32> to vector<1x1x4xf32>
    %51 = vector.shape_cast %50 : vector<1x1x4xf32> to vector<1x4xf32>
    %52 = vector.broadcast %49 : vector<8x1xf32> to vector<8x4xf32>
    %53 = vector.broadcast %51 : vector<1x4xf32> to vector<8x4xf32>
    %54 = arith.mulf %52, %53 : vector<8x4xf32>
    %55 = arith.addf %48, %54 : vector<8x4xf32>
    %56 = vector.extract_strided_slice %0 {offsets = [0, 0], sizes = [8, 1], strides = [1, 1]} : vector<8x4xf32> to vector<8x1xf32>
    %57 = vector.extract_strided_slice %1 {offsets = [2, 0, 0], sizes = [1, 1, 4], strides = [1, 1, 1]} : vector<3x4x4xf32> to vector<1x1x4xf32>
    %58 = vector.shape_cast %57 : vector<1x1x4xf32> to vector<1x4xf32>
    %59 = vector.broadcast %56 : vector<8x1xf32> to vector<8x4xf32>
    %60 = vector.broadcast %58 : vector<1x4xf32> to vector<8x4xf32>
    %61 = arith.mulf %59, %60 : vector<8x4xf32>
    %62 = vector.extract_strided_slice %0 {offsets = [0, 1], sizes = [8, 1], strides = [1, 1]} : vector<8x4xf32> to vector<8x1xf32>
    %63 = vector.extract_strided_slice %1 {offsets = [2, 1, 0], sizes = [1, 1, 4], strides = [1, 1, 1]} : vector<3x4x4xf32> to vector<1x1x4xf32>
    %64 = vector.shape_cast %63 : vector<1x1x4xf32> to vector<1x4xf32>
    %65 = vector.broadcast %62 : vector<8x1xf32> to vector<8x4xf32>
    %66 = vector.broadcast %64 : vector<1x4xf32> to vector<8x4xf32>
    %67 = arith.mulf %65, %66 : vector<8x4xf32>
    %68 = arith.addf %61, %67 : vector<8x4xf32>
    %69 = vector.extract_strided_slice %0 {offsets = [0, 2], sizes = [8, 1], strides = [1, 1]} : vector<8x4xf32> to vector<8x1xf32>
    %70 = vector.extract_strided_slice %1 {offsets = [2, 2, 0], sizes = [1, 1, 4], strides = [1, 1, 1]} : vector<3x4x4xf32> to vector<1x1x4xf32>
    %71 = vector.shape_cast %70 : vector<1x1x4xf32> to vector<1x4xf32>
    %72 = vector.broadcast %69 : vector<8x1xf32> to vector<8x4xf32>
    %73 = vector.broadcast %71 : vector<1x4xf32> to vector<8x4xf32>
    %74 = arith.mulf %72, %73 : vector<8x4xf32>
    %75 = arith.addf %68, %74 : vector<8x4xf32>
    %76 = vector.extract_strided_slice %0 {offsets = [0, 3], sizes = [8, 1], strides = [1, 1]} : vector<8x4xf32> to vector<8x1xf32>
    %77 = vector.extract_strided_slice %1 {offsets = [2, 3, 0], sizes = [1, 1, 4], strides = [1, 1, 1]} : vector<3x4x4xf32> to vector<1x1x4xf32>
    %78 = vector.shape_cast %77 : vector<1x1x4xf32> to vector<1x4xf32>
    %79 = vector.broadcast %76 : vector<8x1xf32> to vector<8x4xf32>
    %80 = vector.broadcast %78 : vector<1x4xf32> to vector<8x4xf32>
    %81 = arith.mulf %79, %80 : vector<8x4xf32>
    %82 = arith.addf %75, %81 : vector<8x4xf32>
    %83 = tpu.concatenate %28, %55, %82 in 0 : vector<8x4xf32>, vector<8x4xf32>, vector<8x4xf32> -> vector<24x4xf32>
    %c0_4 = arith.constant 0 : index
    %c0_5 = arith.constant 0 : index
    %c0_6 = arith.constant 0 : index
    %84 = vector.load %arg1[%c0_4, %c0_5, %c0_6] : memref<1x3x1xf32, #tpu.memory_space<vmem>>, vector<1x3x1xf32>
    %85 = vector.shape_cast %84 : vector<1x3x1xf32> to vector<3x1xf32>
    %cst = arith.constant 6.28318548 : f32
    %86 = vector.broadcast %cst : f32 to vector<3x1xf32>
    %87 = arith.mulf %86, %85 : vector<3x1xf32>
    %c0_7 = arith.constant 0 : index
    %c0_8 = arith.constant 0 : index
    %88 = vector.load %arg5[%c0_7, %c0_8] : memref<1x8xf32, #tpu.memory_space<vmem>>, vector<1x8xf32>
    %89 = vector.broadcast %87 : vector<3x1xf32> to vector<3x8xf32>
    %90 = vector.broadcast %88 : vector<1x8xf32> to vector<3x8xf32>
    %91 = arith.mulf %89, %90 : vector<3x8xf32>
    %92 = math.sin %91 : vector<3x8xf32>
    %93 = math.cos %91 : vector<3x8xf32>
    %c0_9 = arith.constant 0 : index
    %c0_10 = arith.constant 0 : index
    %c0_11 = arith.constant 0 : index
    %94 = vector.load %arg3[%c0_9, %c0_10, %c0_11] : memref<1x3x16xf32, #tpu.memory_space<vmem>>, vector<1x3x16xf32>
    %95 = vector.shape_cast %94 : vector<1x3x16xf32> to vector<3x16xf32>
    %96 = tpu.concatenate %92, %93, %95 in 1 : vector<3x8xf32>, vector<3x8xf32>, vector<3x16xf32> -> vector<3x32xf32>
    %c8 = arith.constant 8 : index
    %c0_12 = arith.constant 0 : index
    %97 = vector.load %arg6[%c8, %c0_12] : memref<81x32xf32, #tpu.memory_space<vmem>>, vector<32x32xf32>
    %cst_13 = arith.constant dense<0.000000e+00> : vector<3x32xf32>
    %98 = tpu.matmul %96, %97, %cst_13 {dimension_numbers = #tpu.dot_dimension_numbers<[1], [0], [0], [1], [0, 0, 1, 1], [], []>} : vector<3x32xf32>, vector<32x32xf32>, vector<3x32xf32> -> vector<3x32xf32>
    %c40 = arith.constant 40 : index
    %c0_14 = arith.constant 0 : index
    %99 = vector.load %arg6[%c40, %c0_14] : memref<81x32xf32, #tpu.memory_space<vmem>>, vector<1x32xf32>
    %100 = vector.broadcast %99 : vector<1x32xf32> to vector<3x32xf32>
    %101 = arith.addf %98, %100 : vector<3x32xf32>
    %102 = vector.extract_strided_slice %101 {offsets = [0, 0], sizes = [1, 32], strides = [1, 1]} : vector<3x32xf32> to vector<1x32xf32>
    %103 = vector.shape_cast %102 : vector<1x32xf32> to vector<1x32xf32>
    %104 = vector.broadcast %103 : vector<1x32xf32> to vector<8x32xf32>
    %105 = vector.extract_strided_slice %101 {offsets = [1, 0], sizes = [1, 32], strides = [1, 1]} : vector<3x32xf32> to vector<1x32xf32>
    %106 = vector.shape_cast %105 : vector<1x32xf32> to vector<1x32xf32>
    %107 = vector.broadcast %106 : vector<1x32xf32> to vector<8x32xf32>
    %108 = vector.extract_strided_slice %101 {offsets = [2, 0], sizes = [1, 32], strides = [1, 1]} : vector<3x32xf32> to vector<1x32xf32>
    %109 = vector.shape_cast %108 : vector<1x32xf32> to vector<1x32xf32>
    %110 = vector.broadcast %109 : vector<1x32xf32> to vector<8x32xf32>
    %111 = tpu.concatenate %104, %107, %110 in 0 : vector<8x32xf32>, vector<8x32xf32>, vector<8x32xf32> -> vector<24x32xf32>
    %c0_15 = arith.constant 0 : index
    %c0_16 = arith.constant 0 : index
    %112 = vector.load %arg6[%c0_15, %c0_16] : memref<81x32xf32, #tpu.memory_space<vmem>>, vector<4x32xf32>
    %cst_17 = arith.constant dense<0.000000e+00> : vector<24x32xf32>
    %113 = tpu.matmul %83, %112, %cst_17 {dimension_numbers = #tpu.dot_dimension_numbers<[1], [0], [0], [1], [0, 0, 1, 1], [], []>} : vector<24x4xf32>, vector<4x32xf32>, vector<24x32xf32> -> vector<24x32xf32>
    %114 = arith.addf %113, %111 : vector<24x32xf32>
    %cst_18 = arith.constant 0.000000e+00 : f32
    %115 = vector.broadcast %cst_18 : f32 to vector<24x32xf32>
    %116 = arith.maximumf %114, %115 : vector<24x32xf32>
    %c48 = arith.constant 48 : index
    %c0_19 = arith.constant 0 : index
    %117 = vector.load %arg6[%c48, %c0_19] : memref<81x32xf32, #tpu.memory_space<vmem>>, vector<32x32xf32>
    %cst_20 = arith.constant dense<0.000000e+00> : vector<24x32xf32>
    %118 = tpu.matmul %116, %117, %cst_20 {dimension_numbers = #tpu.dot_dimension_numbers<[1], [0], [0], [1], [0, 0, 1, 1], [], []>} : vector<24x32xf32>, vector<32x32xf32>, vector<24x32xf32> -> vector<24x32xf32>
    %c80 = arith.constant 80 : index
    %c0_21 = arith.constant 0 : index
    %119 = vector.load %arg6[%c80, %c0_21] : memref<81x32xf32, #tpu.memory_space<vmem>>, vector<1x32xf32>
    %120 = vector.broadcast %119 : vector<1x32xf32> to vector<24x32xf32>
    %121 = arith.addf %118, %120 : vector<24x32xf32>
    %cst_22 = arith.constant 0.000000e+00 : f32
    %122 = vector.broadcast %cst_22 : f32 to vector<24x32xf32>
    %123 = arith.maximumf %121, %122 : vector<24x32xf32>
    %c0_23 = arith.constant 0 : index
    %c0_24 = arith.constant 0 : index
    %124 = vector.load %arg7[%c0_23, %c0_24] : memref<33x8xf32, #tpu.memory_space<vmem>>, vector<32x8xf32>
    %cst_25 = arith.constant dense<0.000000e+00> : vector<24x8xf32>
    %125 = tpu.matmul %123, %124, %cst_25 {dimension_numbers = #tpu.dot_dimension_numbers<[1], [0], [0], [1], [0, 0, 1, 1], [], []>} : vector<24x32xf32>, vector<32x8xf32>, vector<24x8xf32> -> vector<24x8xf32>
    %c32 = arith.constant 32 : index
    %c0_26 = arith.constant 0 : index
    %126 = vector.load %arg7[%c32, %c0_26] : memref<33x8xf32, #tpu.memory_space<vmem>>, vector<1x8xf32>
    %127 = vector.broadcast %126 : vector<1x8xf32> to vector<24x8xf32>
    %128 = arith.addf %125, %127 : vector<24x8xf32>
    %129 = tpu.iota {dimensions = array<i32: 1>} : vector<8x64xi32>
    %130 = tpu.iota {dimensions = array<i32: 0>} : vector<8x64xi32>
    %c8_i32 = arith.constant 8 : i32
    %131 = vector.broadcast %c8_i32 : i32 to vector<8x64xi32>
    %132 = arith.muli %130, %131 : vector<8x64xi32>
    %133 = arith.subi %129, %132 : vector<8x64xi32>
    %c0_i32 = arith.constant 0 : i32
    %134 = vector.broadcast %c0_i32 : i32 to vector<8x64xi32>
    %135 = arith.cmpi sge, %133, %134 : vector<8x64xi32>
    %c8_i32_27 = arith.constant 8 : i32
    %136 = vector.broadcast %c8_i32_27 : i32 to vector<8x64xi32>
    %137 = arith.cmpi slt, %133, %136 : vector<8x64xi32>
    %138 = arith.andi %135, %137 : vector<8x64xi1>
    %139 = vector.extract_strided_slice %128 {offsets = [0, 0], sizes = [8, 8], strides = [1, 1]} : vector<24x8xf32> to vector<8x8xf32>
    %140 = tpu.concatenate %139, %139, %139, %139, %139, %139, %139, %139 in 1 : vector<8x8xf32>, vector<8x8xf32>, vector<8x8xf32>, vector<8x8xf32>, vector<8x8xf32>, vector<8x8xf32>, vector<8x8xf32>, vector<8x8xf32> -> vector<8x64xf32>
    %cst_28 = arith.constant 0.000000e+00 : f32
    %141 = vector.broadcast %cst_28 : f32 to vector<8x64xf32>
    %142 = arith.select %138, %140, %141 : vector<8x64xi1>, vector<8x64xf32>
    %cst_29 = arith.constant dense<0.000000e+00> : vector<64xf32>
    %143 = vector.multi_reduction <add>, %142, %cst_29 [0] : vector<8x64xf32> to vector<64xf32>
    %144 = vector.shape_cast %143 : vector<64xf32> to vector<1x64xf32>
    %145 = vector.extract_strided_slice %128 {offsets = [8, 0], sizes = [8, 8], strides = [1, 1]} : vector<24x8xf32> to vector<8x8xf32>
    %146 = tpu.concatenate %145, %145, %145, %145, %145, %145, %145, %145 in 1 : vector<8x8xf32>, vector<8x8xf32>, vector<8x8xf32>, vector<8x8xf32>, vector<8x8xf32>, vector<8x8xf32>, vector<8x8xf32>, vector<8x8xf32> -> vector<8x64xf32>
    %cst_30 = arith.constant 0.000000e+00 : f32
    %147 = vector.broadcast %cst_30 : f32 to vector<8x64xf32>
    %148 = arith.select %138, %146, %147 : vector<8x64xi1>, vector<8x64xf32>
    %cst_31 = arith.constant dense<0.000000e+00> : vector<64xf32>
    %149 = vector.multi_reduction <add>, %148, %cst_31 [0] : vector<8x64xf32> to vector<64xf32>
    %150 = vector.shape_cast %149 : vector<64xf32> to vector<1x64xf32>
    %151 = vector.extract_strided_slice %128 {offsets = [16, 0], sizes = [8, 8], strides = [1, 1]} : vector<24x8xf32> to vector<8x8xf32>
    %152 = tpu.concatenate %151, %151, %151, %151, %151, %151, %151, %151 in 1 : vector<8x8xf32>, vector<8x8xf32>, vector<8x8xf32>, vector<8x8xf32>, vector<8x8xf32>, vector<8x8xf32>, vector<8x8xf32>, vector<8x8xf32> -> vector<8x64xf32>
    %cst_32 = arith.constant 0.000000e+00 : f32
    %153 = vector.broadcast %cst_32 : f32 to vector<8x64xf32>
    %154 = arith.select %138, %152, %153 : vector<8x64xi1>, vector<8x64xf32>
    %cst_33 = arith.constant dense<0.000000e+00> : vector<64xf32>
    %155 = vector.multi_reduction <add>, %154, %cst_33 [0] : vector<8x64xf32> to vector<64xf32>
    %156 = vector.shape_cast %155 : vector<64xf32> to vector<1x64xf32>
    %157 = tpu.concatenate %144, %150, %156 in 0 : vector<1x64xf32>, vector<1x64xf32>, vector<1x64xf32> -> vector<3x64xf32>
    %c0_34 = arith.constant 0 : index
    %c0_35 = arith.constant 0 : index
    %158 = vector.load %arg8[%c0_34, %c0_35] : memref<81x32xf32, #tpu.memory_space<vmem>>, vector<64x32xf32>
    %cst_36 = arith.constant dense<0.000000e+00> : vector<3x32xf32>
    %159 = tpu.matmul %157, %158, %cst_36 {dimension_numbers = #tpu.dot_dimension_numbers<[1], [0], [0], [1], [0, 0, 1, 1], [], []>} : vector<3x64xf32>, vector<64x32xf32>, vector<3x32xf32> -> vector<3x32xf32>
    %c64 = arith.constant 64 : index
    %c0_37 = arith.constant 0 : index
    %160 = vector.load %arg8[%c64, %c0_37] : memref<81x32xf32, #tpu.memory_space<vmem>>, vector<1x32xf32>
    %161 = vector.broadcast %160 : vector<1x32xf32> to vector<3x32xf32>
    %162 = arith.addf %159, %161 : vector<3x32xf32>
    %cst_38 = arith.constant 0.000000e+00 : f32
    %163 = vector.broadcast %cst_38 : f32 to vector<3x32xf32>
    %164 = arith.maximumf %162, %163 : vector<3x32xf32>
    %c72 = arith.constant 72 : index
    %c0_39 = arith.constant 0 : index
    %165 = vector.load %arg8[%c72, %c0_39] : memref<81x32xf32, #tpu.memory_space<vmem>>, vector<1x32xf32>
    %c80_40 = arith.constant 80 : index
    %c0_41 = arith.constant 0 : index
    %166 = vector.load %arg8[%c80_40, %c0_41] : memref<81x32xf32, #tpu.memory_space<vmem>>, vector<1x32xf32>
    %167 = vector.extract_strided_slice %166 {offsets = [0, 0], sizes = [1, 1], strides = [1, 1]} : vector<1x32xf32> to vector<1x1xf32>
    %168 = vector.broadcast %165 : vector<1x32xf32> to vector<3x32xf32>
    %169 = arith.mulf %164, %168 : vector<3x32xf32>
    %cst_42 = arith.constant dense<0.000000e+00> : vector<3xf32>
    %170 = vector.multi_reduction <add>, %169, %cst_42 [1] : vector<3x32xf32> to vector<3xf32>
    %171 = vector.shape_cast %170 : vector<3xf32> to vector<3x1xf32>
    %172 = vector.broadcast %167 : vector<1x1xf32> to vector<3x1xf32>
    %173 = arith.addf %171, %172 : vector<3x1xf32>
    %c0_43 = arith.constant 0 : index
    %c0_44 = arith.constant 0 : index
    %c0_45 = arith.constant 0 : index
    %174 = vector.load %arg9[%c0_43, %c0_44, %c0_45] : memref<1x3x1xf32, #tpu.memory_space<vmem>>, vector<1x3x1xf32>
    %175 = vector.shape_cast %174 : vector<1x3x1xf32> to vector<3x1xf32>
    %176 = vector.shape_cast %173 : vector<3x1xf32> to vector<1x3x1xf32>
    tpu.vector_store %arg9[%c0_43, %c0_44, %c0_45], %176 {strides = array<i32>} : memref<1x3x1xf32, #tpu.memory_space<vmem>>, vector<1x3x1xf32>,
    return
  }
  func.func @transform_0(%arg0: i32) -> (i32, i32, i32) {
    %c0_i32 = arith.constant 0 : i32
    %c0_i32_0 = arith.constant 0 : i32
    %c0_i32_1 = arith.constant 0 : i32
    return %arg0, %c0_i32, %c0_i32_0 : i32, i32, i32
  }
  func.func @transform_1(%arg0: i32) -> (i32, i32, i32) {
    %c0_i32 = arith.constant 0 : i32
    %c0_i32_0 = arith.constant 0 : i32
    %c0_i32_1 = arith.constant 0 : i32
    return %arg0, %c0_i32, %c0_i32_0 : i32, i32, i32
  }
  func.func @transform_2(%arg0: i32) -> (i32, i32, i32) {
    %c0_i32 = arith.constant 0 : i32
    %c0_i32_0 = arith.constant 0 : i32
    %c0_i32_1 = arith.constant 0 : i32
    return %arg0, %c0_i32, %c0_i32_0 : i32, i32, i32
  }
  func.func @transform_3(%arg0: i32) -> (i32, i32) {
    %c0_i32 = arith.constant 0 : i32
    %c0_i32_0 = arith.constant 0 : i32
    %c0_i32_1 = arith.constant 0 : i32
    return %c0_i32, %c0_i32_0 : i32, i32
  }
  func.func @transform_4(%arg0: i32) -> (i32, i32) {
    %c0_i32 = arith.constant 0 : i32
    %c0_i32_0 = arith.constant 0 : i32
    %c0_i32_1 = arith.constant 0 : i32
    return %c0_i32, %c0_i32_0 : i32, i32
  }
  func.func @transform_5(%arg0: i32) -> (i32, i32) {
    %c0_i32 = arith.constant 0 : i32
    %c0_i32_0 = arith.constant 0 : i32
    %c0_i32_1 = arith.constant 0 : i32
    return %c0_i32, %c0_i32_0 : i32, i32
  }
  func.func @transform_6(%arg0: i32) -> (i32, i32) {
    %c0_i32 = arith.constant 0 : i32
    %c0_i32_0 = arith.constant 0 : i32
    %c0_i32_1 = arith.constant 0 : i32
    return %c0_i32, %c0_i32_0 : i32, i32
  }
  func.func @transform_7(%arg0: i32) -> (i32, i32) {
    %c0_i32 = arith.constant 0 : i32
    %c0_i32_0 = arith.constant 0 : i32
    %c0_i32_1 = arith.constant 0 : i32
    return %c0_i32, %c0_i32_0 : i32, i32
  }
  func.func @transform_8(%arg0: i32) -> (i32, i32, i32) {
    %c0_i32 = arith.constant 0 : i32
    %c0_i32_0 = arith.constant 0 : i32
    %c0_i32_1 = arith.constant 0 : i32
    return %arg0, %c0_i32, %c0_i32_0 : i32, i32, i32
  }
}

</mosaic_0001>

<llo_original>
// kernel: tpu_custom_call.1
$region0: #{tpu_custom_call.1}
  #allocation0 [shape = 'u32[]', space=smem, size = 0x4, offset = 0x4, fixed_abs, tag = 'smem constant byte address 0x4 - core index']
  #allocation1 [shape = 'u32[144,128]{1,0:T(1,128)}', space=vmem, size = 0x12000, scoped, tag = 'internal scratch']
  %s0 = inlined_call_operand.vmem [shape: f32[2,3,1], index: 0, kind: input, shape index: {}]
  %s1 = inlined_call_operand.vmem [shape: f32[6,4,4], index: 1, kind: input, shape index: {}]
  %s2 = inlined_call_operand.vmem [shape: f32[2,3,16], index: 2, kind: input, shape index: {}]
  %s3 = inlined_call_operand.vmem [shape: f32[8,4], index: 3, kind: input, shape index: {}]
  %s4 = inlined_call_operand.vmem [shape: f32[1,8], index: 4, kind: input, shape index: {}]
  %s5 = inlined_call_operand.vmem [shape: f32[81,32], index: 5, kind: input, shape index: {}]
  %s6 = inlined_call_operand.vmem [shape: f32[33,8], index: 6, kind: input, shape index: {}]
  %s7 = inlined_call_operand.vmem [shape: f32[81,32], index: 7, kind: input, shape index: {}]
  %s8 = inlined_call_operand.vmem [shape: f32[2,3,1], index: 8, kind: output, shape index: {}]
  %s9 = sld [smem:[#allocation0]]
  $region65: #{tpu_custom_call.1} parent=0
    _
  %s11 = ssub.s32 1, %s9
  %s12 = scalar_select 0, %s11, %s9
  loop: start=0, step=1, limit=4
  $region2: #{tpu_custom_call.1} parent=0 // loop_pre_header
    _
  $region3: #{tpu_custom_call.1} parent=0 // loop_header
    %s14 = sphi 0, %s18
    %p15 = scmp.ge.s32.totalorder %s14, 4
    %s24 = sphi 0, %s26
    %s27 = sphi 0, %s24
    %s28 = sphi 0, %s27
    %s44 = sphi 0, %s28
    %s50 = sphi 0, %s52
    %s53 = sphi 0, %s50
    %s54 = sphi 0, %s53
    %s70 = sphi 0, %s54
    %s76 = sphi 0, %s78
    %s79 = sphi 0, %s76
    %s80 = sphi 0, %s79
    %s96 = sphi 0, %s80
    %s100 = sphi 0, %s100
    %s102 = sphi 0, %s100
    %s103 = sphi 0, %s102
    %s117 = sphi 0, %s103
    %s121 = sphi 0, %s121
    %s123 = sphi 0, %s121
    %s124 = sphi 0, %s123
    %s138 = sphi 0, %s124
    %s142 = sphi 0, %s142
    %s144 = sphi 0, %s142
    %s145 = sphi 0, %s144
    %s159 = sphi 0, %s145
    %s163 = sphi 0, %s163
    %s165 = sphi 0, %s163
    %s166 = sphi 0, %s165
    %s180 = sphi 0, %s166
    %s184 = sphi 0, %s184
    %s186 = sphi 0, %s184
    %s187 = sphi 0, %s186
    %s201 = sphi 0, %s187
    %s207 = sphi 0, %s209
    %s210 = sphi 0, %s207
    %s211 = sphi 0, %s210
    %s227 = sphi 0, %s211
  $region4: #{tpu_custom_call.1} parent=0 // loop_header_branch
    %17 = sbr.rel (%p15) target = $region8
  $region5: #{tpu_custom_call.1} parent=0 // loop_body
    %s19 = ssub.s32 %s14, 1
    %s20 = ssub.s32 %s14, 2
    %s21 = sadd.s32 %s14, 1
    %s22 = ssub.s32 %s14, %s21
    %p23 = scmp.eq.s32.totalorder %s22, 0
    %s25 = sadd.s32 %s24, 1
    %s26 = scalar_select %p23, %s24, %s25
    %p29 = pneg %p23
    %p30 = scmp.eq.s32.totalorder %s14, 1
    %p31 = por %p29, %p30
    %p32 = scmp.ne.s32.totalorder %s24, %s27
    %p33 = scmp.eq.s32.totalorder %s14, 0
    %p34 = por %p32, %p33
    %p35 = scmp.ne.s32.totalorder %s24, %s27
    %p36 = scmp.eq.s32.totalorder %s19, 1
    %p37 = por %p35, %p36
    %p38 = scmp.ne.s32.totalorder %s27, %s28
    %p39 = scmp.eq.s32.totalorder %s19, 0
    %p40 = por %p38, %p39
    %p41 = scmp.ne.s32.totalorder %s27, %s28
    %p42 = scmp.eq.s32.totalorder %s20, 1
    %p43 = por %p41, %p42
    %p45 = scmp.ne.s32.totalorder %s28, %s44
    %p46 = scmp.eq.s32.totalorder %s20, 0
    %p47 = por %p45, %p46
    %s48 = ssub.s32 %s14, %s21
    %p49 = scmp.eq.s32.totalorder %s48, 0
    %s51 = sadd.s32 %s50, 1
    %s52 = scalar_select %p49, %s50, %s51
    %p55 = pneg %p49
    %p56 = scmp.eq.s32.totalorder %s14, 1
    %p57 = por %p55, %p56
    %p58 = scmp.ne.s32.totalorder %s50, %s53
    %p59 = scmp.eq.s32.totalorder %s14, 0
    %p60 = por %p58, %p59
    %p61 = scmp.ne.s32.totalorder %s50, %s53
    %p62 = scmp.eq.s32.totalorder %s19, 1
    %p63 = por %p61, %p62
    %p64 = scmp.ne.s32.totalorder %s53, %s54
    %p65 = scmp.eq.s32.totalorder %s19, 0
    %p66 = por %p64, %p65
    %p67 = scmp.ne.s32.totalorder %s53, %s54
    %p68 = scmp.eq.s32.totalorder %s20, 1
    %p69 = por %p67, %p68
    %p71 = scmp.ne.s32.totalorder %s54, %s70
    %p72 = scmp.eq.s32.totalorder %s20, 0
    %p73 = por %p71, %p72
    %s74 = ssub.s32 %s14, %s21
    %p75 = scmp.eq.s32.totalorder %s74, 0
    %s77 = sadd.s32 %s76, 1
    %s78 = scalar_select %p75, %s76, %s77
    %p81 = pneg %p75
    %p82 = scmp.eq.s32.totalorder %s14, 1
    %p83 = por %p81, %p82
    %p84 = scmp.ne.s32.totalorder %s76, %s79
    %p85 = scmp.eq.s32.totalorder %s14, 0
    %p86 = por %p84, %p85
    %p87 = scmp.ne.s32.totalorder %s76, %s79
    %p88 = scmp.eq.s32.totalorder %s19, 1
    %p89 = por %p87, %p88
    %p90 = scmp.ne.s32.totalorder %s79, %s80
    %p91 = scmp.eq.s32.totalorder %s19, 0
    %p92 = por %p90, %p91
    %p93 = scmp.ne.s32.totalorder %s79, %s80
    %p94 = scmp.eq.s32.totalorder %s20, 1
    %p95 = por %p93, %p94
    %p97 = scmp.ne.s32.totalorder %s80, %s96
    %p98 = scmp.eq.s32.totalorder %s20, 0
    %p99 = por %p97, %p98
    %s101 = sadd.s32 %s100, 1
    %p104 = scmp.eq.s32.totalorder %s14, 1
    %p105 = scmp.ne.s32.totalorder %s100, %s102
    %p106 = scmp.eq.s32.totalorder %s14, 0
    %p107 = por %p105, %p106
    %p108 = scmp.ne.s32.totalorder %s100, %s102
    %p109 = scmp.eq.s32.totalorder %s19, 1
    %p110 = por %p108, %p109
    %p111 = scmp.ne.s32.totalorder %s102, %s103
    %p112 = scmp.eq.s32.totalorder %s19, 0
    %p113 = por %p111, %p112
    %p114 = scmp.ne.s32.totalorder %s102, %s103
    %p115 = scmp.eq.s32.totalorder %s20, 1
    %p116 = por %p114, %p115
    %p118 = scmp.ne.s32.totalorder %s103, %s117
    %p119 = scmp.eq.s32.totalorder %s20, 0
    %p120 = por %p118, %p119
    %s122 = sadd.s32 %s121, 1
    %p125 = scmp.eq.s32.totalorder %s14, 1
    %p126 = scmp.ne.s32.totalorder %s121, %s123
    %p127 = scmp.eq.s32.totalorder %s14, 0
    %p128 = por %p126, %p127
    %p129 = scmp.ne.s32.totalorder %s121, %s123
    %p130 = scmp.eq.s32.totalorder %s19, 1
    %p131 = por %p129, %p130
    %p132 = scmp.ne.s32.totalorder %s123, %s124
    %p133 = scmp.eq.s32.totalorder %s19, 0
    %p134 = por %p132, %p133
    %p135 = scmp.ne.s32.totalorder %s123, %s124
    %p136 = scmp.eq.s32.totalorder %s20, 1
    %p137 = por %p135, %p136
    %p139 = scmp.ne.s32.totalorder %s124, %s138
    %p140 = scmp.eq.s32.totalorder %s20, 0
    %p141 = por %p139, %p140
    %s143 = sadd.s32 %s142, 1
    %p146 = scmp.eq.s32.totalorder %s14, 1
    %p147 = scmp.ne.s32.totalorder %s142, %s144
    %p148 = scmp.eq.s32.totalorder %s14, 0
    %p149 = por %p147, %p148
    %p150 = scmp.ne.s32.totalorder %s142, %s144
    %p151 = scmp.eq.s32.totalorder %s19, 1
    %p152 = por %p150, %p151
    %p153 = scmp.ne.s32.totalorder %s144, %s145
    %p154 = scmp.eq.s32.totalorder %s19, 0
    %p155 = por %p153, %p154
    %p156 = scmp.ne.s32.totalorder %s144, %s145
    %p157 = scmp.eq.s32.totalorder %s20, 1
    %p158 = por %p156, %p157
    %p160 = scmp.ne.s32.totalorder %s145, %s159
    %p161 = scmp.eq.s32.totalorder %s20, 0
    %p162 = por %p160, %p161
    %s164 = sadd.s32 %s163, 1
    %p167 = scmp.eq.s32.totalorder %s14, 1
    %p168 = scmp.ne.s32.totalorder %s163, %s165
    %p169 = scmp.eq.s32.totalorder %s14, 0
    %p170 = por %p168, %p169
    %p171 = scmp.ne.s32.totalorder %s163, %s165
    %p172 = scmp.eq.s32.totalorder %s19, 1
    %p173 = por %p171, %p172
    %p174 = scmp.ne.s32.totalorder %s165, %s166
    %p175 = scmp.eq.s32.totalorder %s19, 0
    %p176 = por %p174, %p175
    %p177 = scmp.ne.s32.totalorder %s165, %s166
    %p178 = scmp.eq.s32.totalorder %s20, 1
    %p179 = por %p177, %p178
    %p181 = scmp.ne.s32.totalorder %s166, %s180
    %p182 = scmp.eq.s32.totalorder %s20, 0
    %p183 = por %p181, %p182
    %s185 = sadd.s32 %s184, 1
    %p188 = scmp.eq.s32.totalorder %s14, 1
    %p189 = scmp.ne.s32.totalorder %s184, %s186
    %p190 = scmp.eq.s32.totalorder %s14, 0
    %p191 = por %p189, %p190
    %p192 = scmp.ne.s32.totalorder %s184, %s186
    %p193 = scmp.eq.s32.totalorder %s19, 1
    %p194 = por %p192, %p193
    %p195 = scmp.ne.s32.totalorder %s186, %s187
    %p196 = scmp.eq.s32.totalorder %s19, 0
    %p197 = por %p195, %p196
    %p198 = scmp.ne.s32.totalorder %s186, %s187
    %p199 = scmp.eq.s32.totalorder %s20, 1
    %p200 = por %p198, %p199
    %p202 = scmp.ne.s32.totalorder %s187, %s201
    %p203 = scmp.eq.s32.totalorder %s20, 0
    %p204 = por %p202, %p203
    %s205 = ssub.s32 %s14, %s21
    %p206 = scmp.eq.s32.totalorder %s205, 0
    %s208 = sadd.s32 %s207, 1
    %s209 = scalar_select %p206, %s207, %s208
    %p212 = pneg %p206
    %p213 = scmp.eq.s32.totalorder %s14, 1
    %p214 = por %p212, %p213
    %p215 = scmp.ne.s32.totalorder %s207, %s210
    %p216 = scmp.eq.s32.totalorder %s14, 0
    %p217 = por %p215, %p216
    %p218 = scmp.ne.s32.totalorder %s207, %s210
    %p219 = scmp.eq.s32.totalorder %s19, 1
    %p220 = por %p218, %p219
    %p221 = scmp.ne.s32.totalorder %s210, %s211
    %p222 = scmp.eq.s32.totalorder %s19, 0
    %p223 = por %p221, %p222
    %p224 = scmp.ne.s32.totalorder %s210, %s211
    %p225 = scmp.eq.s32.totalorder %s20, 1
    %p226 = por %p224, %p225
    %p228 = scmp.ne.s32.totalorder %s211, %s227
    %p229 = scmp.eq.s32.totalorder %s20, 0
    %p230 = por %p228, %p229
    %p231 = scmp.le.s32.totalorder 1, %s14
    %p232 = scmp.lt.s32.totalorder %s14, 3
    %p233 = pnand %p231, %p232
    %p234 = pneg %p233
    // Predicated region
    $region9: #{tpu_custom_call.1} parent=5 // pred_check
      _
    $region10: #{tpu_custom_call.1} parent=5 // pred_check_branch
      %236 = sbr.rel (%p233) target = $region12
    $region11: #{tpu_custom_call.1} parent=5 // pred_region
      %s237 = ssub.s32 %s14, 1
      // Predicated region
      $region13: #{tpu_custom_call.1} parent=11 // pred_check
        %p238 = pneg %p113
      $region14: #{tpu_custom_call.1} parent=11 // pred_check_branch
        %240 = sbr.rel (%p238) target = $region16
      $region15: #{tpu_custom_call.1} parent=11 // pred_region
        _
      $region16: #{tpu_custom_call.1} parent=11 // pred_fallthru
        _
      // Predicated region
      $region17: #{tpu_custom_call.1} parent=11 // pred_check
        %p241 = pneg %p134
      $region18: #{tpu_custom_call.1} parent=11 // pred_check_branch
        %243 = sbr.rel (%p241) target = $region20
      $region19: #{tpu_custom_call.1} parent=11 // pred_region
        _
      $region20: #{tpu_custom_call.1} parent=11 // pred_fallthru
        _
      // Predicated region
      $region21: #{tpu_custom_call.1} parent=11 // pred_check
        %p244 = pneg %p155
      $region22: #{tpu_custom_call.1} parent=11 // pred_check_branch
        %246 = sbr.rel (%p244) target = $region24
      $region23: #{tpu_custom_call.1} parent=11 // pred_region
        _
      $region24: #{tpu_custom_call.1} parent=11 // pred_fallthru
        _
      // Predicated region
      $region25: #{tpu_custom_call.1} parent=11 // pred_check
        %p247 = pneg %p176
      $region26: #{tpu_custom_call.1} parent=11 // pred_check_branch
        %249 = sbr.rel (%p247) target = $region28
      $region27: #{tpu_custom_call.1} parent=11 // pred_region
        _
      $region28: #{tpu_custom_call.1} parent=11 // pred_fallthru
        _
      // Predicated region
      $region29: #{tpu_custom_call.1} parent=11 // pred_check
        %p250 = pneg %p197
      $region30: #{tpu_custom_call.1} parent=11 // pred_check_branch
        %252 = sbr.rel (%p250) target = $region32
      $region31: #{tpu_custom_call.1} parent=11 // pred_region
        _
      $region32: #{tpu_custom_call.1} parent=11 // pred_fallthru
        _
    $region12: #{tpu_custom_call.1} parent=5 // pred_fallthru
      _
    %p253 = scmp.lt.s32.totalorder %s14, 2
    // Predicated region
    $region33: #{tpu_custom_call.1} parent=5 // pred_check
      %p254 = pneg %p253
    $region34: #{tpu_custom_call.1} parent=5 // pred_check_branch
      %256 = sbr.rel (%p254) target = $region36
    $region35: #{tpu_custom_call.1} parent=5 // pred_region
      // Predicated region
      $region37: #{tpu_custom_call.1} parent=35 // pred_check
        %p257 = pneg %p34
      $region38: #{tpu_custom_call.1} parent=35 // pred_check_branch
        %259 = sbr.rel (%p257) target = $region40
      $region39: #{tpu_custom_call.1} parent=35 // pred_region
        %p260 = scmp.lt.s32.totalorder %s14, 1
        %s261 = scalar_select %p260, %s14, 1
        %s262 = smul.addr %s261, 4
        %s263 = scalar_lea.vmem %s0, %s262
      $region40: #{tpu_custom_call.1} parent=35 // pred_fallthru
        _
      // Predicated region
      $region41: #{tpu_custom_call.1} parent=35 // pred_check
        %p264 = pneg %p60
      $region42: #{tpu_custom_call.1} parent=35 // pred_check_branch
        %266 = sbr.rel (%p264) target = $region44
      $region43: #{tpu_custom_call.1} parent=35 // pred_region
        %s267 = smul.u32 3, %s14
        %p268 = scmp.lt.s32.totalorder %s267, 5
        %s269 = scalar_select %p268, %s267, 5
        %s270 = smul.addr %s269, 4
        %s271 = scalar_lea.vmem %s1, %s270
        %s272 = smul.u32 3, %s14
      $region44: #{tpu_custom_call.1} parent=35 // pred_fallthru
        _
      // Predicated region
      $region45: #{tpu_custom_call.1} parent=35 // pred_check
        %p273 = pneg %p86
      $region46: #{tpu_custom_call.1} parent=35 // pred_check_branch
        %275 = sbr.rel (%p273) target = $region48
      $region47: #{tpu_custom_call.1} parent=35 // pred_region
        %p276 = scmp.lt.s32.totalorder %s14, 1
        %s277 = scalar_select %p276, %s14, 1
        %s278 = smul.addr %s277, 4
        %s279 = scalar_lea.vmem %s2, %s278
      $region48: #{tpu_custom_call.1} parent=35 // pred_fallthru
        _
    $region36: #{tpu_custom_call.1} parent=5 // pred_fallthru
      _
    %p280 = scmp.le.s32.totalorder 1, %s14
    %p281 = scmp.lt.s32.totalorder %s14, 3
    %p282 = pnand %p280, %p281
    %p283 = pneg %p282
    // Predicated region
    $region49: #{tpu_custom_call.1} parent=5 // pred_check
      _
    $region50: #{tpu_custom_call.1} parent=5 // pred_check_branch
      %285 = sbr.rel (%p282) target = $region52
    $region51: #{tpu_custom_call.1} parent=5 // pred_region
      %s286 = ssub.s32 %s14, 1
      %p287 = scmp.lt.s32.totalorder %s19, 1
      %s288 = scalar_select %p287, %s19, 1
      %s289 = smul.addr %s288, 4
      %s290 = scalar_lea.vmem %s0, %s289
      %p291 = pneg %p40
      %p292 = pneg %p37
      %s293 = smul.u32 3, %s19
      %p294 = scmp.lt.s32.totalorder %s293, 5
      %s295 = scalar_select %p294, %s293, 5
      %s296 = smul.addr %s295, 4
      %s297 = scalar_lea.vmem %s1, %s296
      %p298 = pneg %p66
      %p299 = pneg %p63
      %p300 = scmp.lt.s32.totalorder %s19, 1
      %s301 = scalar_select %p300, %s19, 1
      %s302 = smul.addr %s301, 4
      %s303 = scalar_lea.vmem %s2, %s302
      %p304 = pneg %p92
      %p305 = pneg %p89
      %p306 = pneg %p113
      %p307 = pneg %p110
      %p308 = pneg %p134
      %p309 = pneg %p131
      %p310 = pneg %p155
      %p311 = pneg %p152
      %p312 = pneg %p176
      %p313 = pneg %p173
      %p314 = pneg %p197
      %p315 = pneg %p194
      %p316 = pneg %p223
      %p317 = pneg %p220
      %p318 = scmp.lt.s32.totalorder %s19, 1
      %s319 = scalar_select %p318, %s19, 1
      %s320 = smul.addr %s319, 4
      %s321 = scalar_lea.vmem %s8, %s320
      %p322 = scmp.lt.s32.totalorder %s19, 1
      %s323 = scalar_select %p322, %s19, 1
      %s324 = smul.addr %s323, 4
      %s325 = scalar_lea.vmem %s0, %s324
      %s326 = smul.u32 3, %s19
      %p327 = scmp.lt.s32.totalorder %s326, 5
      %s328 = scalar_select %p327, %s326, 5
      %s329 = smul.addr %s328, 4
      %s330 = scalar_lea.vmem %s1, %s329
      %s331 = smul.u32 3, %s19
      %p332 = scmp.lt.s32.totalorder %s19, 1
      %s333 = scalar_select %p332, %s19, 1
      %s334 = smul.addr %s333, 4
      %s335 = scalar_lea.vmem %s2, %s334
      %p336 = scmp.lt.s32.totalorder %s19, 1
      %s337 = scalar_select %p336, %s19, 1
      %s338 = smul.addr %s337, 4
      %s339 = scalar_lea.vmem %s8, %s338
      %v340 = vld [vmem:[%s3] sm:$0xff]
      %v341 = vld [vmem:[%s330] sm:$0xf]
      %v342 = vld [vmem:[%s330 + $0x4] sm:$0xf]
      %v343 = vld [vmem:[%s330 + $0x8] sm:$0xf]
      %345 = vset.pattern.permute.xlu0 0
      %346 = vperm.xlu0 %345, %v340
      %v347 = vpop.permute.xlu0 %346
      %v349 = vlaneseq
      %v350 = vshrl.u32 %v349, 7
      %v351 = vsub.s32 0, %v350
      %v352 = vrot.slane %v341, %v351
      %v353 = vmul.f32 %v347, %v352
      %354 = vset.pattern.permute.xlu0 1
      %355 = vperm.xlu0 %354, %v340
      %v356 = vpop.permute.xlu0 %355
      %v358 = vlaneseq
      %v359 = vshrl.u32 %v358, 7
      %v360 = vsub.s32 1, %v359
      %v361 = vrot.slane %v341, %v360
      %v362 = vmul.f32 %v356, %v361
      %v363 = vadd.f32 %v353, %v362
      %364 = vset.pattern.permute.xlu0 2
      %365 = vperm.xlu0 %364, %v340
      %v366 = vpop.permute.xlu0 %365
      %v368 = vlaneseq
      %v369 = vshrl.u32 %v368, 7
      %v370 = vsub.s32 2, %v369
      %v371 = vrot.slane %v341, %v370
      %v372 = vmul.f32 %v366, %v371
      %v373 = vadd.f32 %v363, %v372
      %374 = vset.pattern.permute.xlu0 3
      %375 = vperm.xlu0 %374, %v340
      %v376 = vpop.permute.xlu0 %375
      %v378 = vlaneseq
      %v379 = vshrl.u32 %v378, 7
      %v380 = vsub.s32 3, %v379
      %v381 = vrot.slane %v341, %v380
      %v382 = vmul.f32 %v376, %v381
      %v383 = vadd.f32 %v373, %v382
      %v384 = vlaneseq
      %v385 = vshrl.u32 %v384, 7
      %v386 = vsub.s32 0, %v385
      %v387 = vrot.slane %v342, %v386
      %v388 = vmul.f32 %v347, %v387
      %v389 = vlaneseq
      %v390 = vshrl.u32 %v389, 7
      %v391 = vsub.s32 1, %v390
      %v392 = vrot.slane %v342, %v391
      %v393 = vmul.f32 %v356, %v392
      %v394 = vadd.f32 %v388, %v393
      %v395 = vlaneseq
      %v396 = vshrl.u32 %v395, 7
      %v397 = vsub.s32 2, %v396
      %v398 = vrot.slane %v342, %v397
      %v399 = vmul.f32 %v366, %v398
      %v400 = vadd.f32 %v394, %v399
      %v401 = vlaneseq
      %v402 = vshrl.u32 %v401, 7
      %v403 = vsub.s32 3, %v402
      %v404 = vrot.slane %v342, %v403
      %v405 = vmul.f32 %v376, %v404
      %v406 = vadd.f32 %v400, %v405
      %v407 = vlaneseq
      %v408 = vshrl.u32 %v407, 7
      %v409 = vsub.s32 0, %v408
      %v410 = vrot.slane %v343, %v409
      %v411 = vmul.f32 %v347, %v410
      %v412 = vlaneseq
      %v413 = vshrl.u32 %v412, 7
      %v414 = vsub.s32 1, %v413
      %v415 = vrot.slane %v343, %v414
      %v416 = vmul.f32 %v356, %v415
      %v417 = vadd.f32 %v411, %v416
      %v418 = vlaneseq
      %v419 = vshrl.u32 %v418, 7
      %v420 = vsub.s32 2, %v419
      %v421 = vrot.slane %v343, %v420
      %v422 = vmul.f32 %v366, %v421
      %v423 = vadd.f32 %v417, %v422
      %v424 = vlaneseq
      %v425 = vshrl.u32 %v424, 7
      %v426 = vsub.s32 3, %v425
      %v427 = vrot.slane %v343, %v426
      %v428 = vmul.f32 %v376, %v427
      %v429 = vadd.f32 %v423, %v428
      %v430 = vld [vmem:[%s325] sm:$0x7]
      %v431 = vmul.f32 %v430, 6.2831855
      %v432 = vld [vmem:[%s4] sm:$0x1]
      %434 = vset.pattern.permute.xlu0 0
      %435 = vperm.xlu0 %434, %v431
      %v436 = vpop.permute.xlu0 %435
      %v439 = vlaneseq
      %v440 = vshrl.u32 %v439, 7
      %v441 = vsub.s32 0, %v440
      %v442 = vrot.slane %v432, %v441
      %v444 = vmul.f32 %v436, %v442
      %v445 = vand.u32 2147483647, %v444
      %vm446 = vcmp.le.f32.partialorder %v445, 0.7853982
      %vm447 = vcmp.lt.s32.totalorder %v444, 0
      %v448 = vand.u32 %v444, 2139095040
      %v449 = vshrl.u32 %v448, 23
      %v450 = vsub.s32 %v449, 127
      %v451 = vand.u32 2147483647, %v444
      %v452 = vand.u32 %v451, 8388607
      %v453 = vor.u32 %v452, 8388608
      %v454 = vsub.s32 0, %v453
      %v455 = vadd.s32 %v450, 1
      %vm456 = vcmp.gt.s32.totalorder %v455, 0
      %v457 = vsel %vm456, %v455, 0
      %v458 = vshrl.u32 %v457, 5
      %v459 = vand.u32 %v457, 31
      %v460 = vsub.s32 32, %v459
      %v461 = vshrl.u32 683565275, %v460
      %v462 = vshll.u32 683565275, %v459
      %v463 = vshrl.u32 2475754826, %v460
      %v464 = vor.u32 %v462, %v463
      %v465 = vshll.u32 2475754826, %v459
      %v466 = vshrl.u32 2131351028, %v460
      %v467 = vor.u32 %v465, %v466
      %v468 = vshll.u32 2131351028, %v459
      %v469 = vshrl.u32 2102212464, %v460
      %v470 = vor.u32 %v468, %v469
      %v471 = vshll.u32 2102212464, %v459
      %v472 = vshrl.u32 920167782, %v460
      %v473 = vor.u32 %v471, %v472
      %v474 = vshll.u32 920167782, %v459
      %v475 = vshrl.u32 1326507024, %v460
      %v476 = vor.u32 %v474, %v475
      %vm477 = vcmp.lt.s32.totalorder %v458, 1
      %vm478 = vcmp.lt.s32.totalorder %v458, 2
      %vm479 = vcmp.lt.s32.totalorder %v458, 3
      %vm480 = vcmp.lt.s32.totalorder %v458, 4
      %v481 = vsel %vm477, %v461, %v464
      %v482 = vsel %vm480, %v470, 2102212464
      %v483 = vsel %vm479, %v467, %v482
      %v484 = vsel %vm478, %v481, %v483
      %v485 = vsel %vm477, %v464, %v467
      %v486 = vsel %vm480, %v473, 920167782
      %v487 = vsel %vm479, %v470, %v486
      %v488 = vsel %vm478, %v485, %v487
      %v489 = vsel %vm477, %v467, %v470
      %v490 = vsel %vm480, %v476, 1326507024
      %v491 = vsel %vm479, %v473, %v490
      %v492 = vsel %vm478, %v489, %v491
      %v493 = vshll.u32 %v453, 8
      %v494 = vmul.u32.u64.compose %v493, %v492
      %v495 = vextract.low.u32 %v494
      %v496 = vextract.high.u32 %v494
      %v497 = vmul.u32.u64.compose %v493, %v488
      %v498 = vextract.low.u32 %v497
      %v499 = vextract.high.u32 %v497
      %v500 = vmul.u32 %v493, %v484
      %v501 = vadd.s32 %v496, %v498
      %vm502 = vc.u32 %v496, %v498
      %v503 = vadd.s32 %v499, 1
      %v504 = vsel %vm502, %v503, %v499
      %v505 = vadd.s32 %v500, %v504
      %v506 = vadd.s32 %v505, 536870912
      %v507 = vshrl.u32 %v506, 30
      %v508 = vshll.u32 %v507, 30
      %v509 = vsub.s32 %v505, %v508
      %vm510 = vcmp.lt.s32.totalorder %v509, 0
      %v511 = vsub.s32 0, %v509
      %v512 = vsel %vm510, %v511, %v509
      %v513 = vclz %v512
      %v514 = vsub.s32 %v513, 2
      %vm515 = vcmp.gt.s32.totalorder 0, %v514
      %v516 = vsel %vm515, 0, %v514
      %v517 = vsub.s32 32, %v516
      %v518 = vshll.u32 %v509, %v516
      %v519 = vshrl.u32 %v501, %v517
      %v520 = vor.u32 %v518, %v519
      %v521 = vsub.s32 4294967266, %v516
      %v522 = vadd.s32 %v521, 127
      %v523 = vshll.u32 %v522, 23
      %v524 = vor.u32 4788187, %v523
      %v525 = vand.u32 2147483647, %v524
      %v527 = vcvt.s32.f32 %v520
      %v528 = vmul.f32 %v527, %v525
      %v529 = vxor.u32 %v528, 2147483648
      %v530 = vsel %vm447, %v529, %v528
      %v531 = vsub.s32 4, %v507
      %v532 = vsel %vm447, %v531, %v507
      %v533 = vsel %vm446, %v444, %v530
      %v534 = vsel %vm446, 0, %v532
      %v535 = vcosq.f32.pop %v533
      %v536 = vsinq.f32.pop %v533
      %vm537 = vweird.f32 %v444
      %v538 = vadd.s32 %v534, 3
      %v539 = vand.u32 %v538, 3
      %vm540 = vcmp.lt.s32.totalorder %v539, 2
      %vm541 = vcmp.eq.s32.totalorder %v539, 0
      %v542 = vxor.u32 %v536, 2147483648
      %v543 = vsel %vm541, %v535, %v542
      %vm544 = vcmp.eq.s32.totalorder %v539, 2
      %v545 = vxor.u32 %v535, 2147483648
      %v546 = vsel %vm544, %v545, %v536
      %v547 = vsel %vm540, %v543, %v546
      %v548 = vsel %vm537, nan, %v547
      %v549 = vand.u32 2147483647, %v444
      %vm550 = vcmp.le.f32.partialorder %v549, 0.7853982
      %vm551 = vcmp.lt.s32.totalorder %v444, 0
      %v552 = vand.u32 %v444, 2139095040
      %v553 = vshrl.u32 %v552, 23
      %v554 = vsub.s32 %v553, 127
      %v555 = vand.u32 2147483647, %v444
      %v556 = vand.u32 %v555, 8388607
      %v557 = vor.u32 %v556, 8388608
      %v558 = vsub.s32 0, %v557
      %v559 = vadd.s32 %v554, 1
      %vm560 = vcmp.gt.s32.totalorder %v559, 0
      %v561 = vsel %vm560, %v559, 0
      %v562 = vshrl.u32 %v561, 5
      %v563 = vand.u32 %v561, 31
      %v564 = vsub.s32 32, %v563
      %v565 = vshrl.u32 683565275, %v564
      %v566 = vshll.u32 683565275, %v563
      %v567 = vshrl.u32 2475754826, %v564
      %v568 = vor.u32 %v566, %v567
      %v569 = vshll.u32 2475754826, %v563
      %v570 = vshrl.u32 2131351028, %v564
      %v571 = vor.u32 %v569, %v570
      %v572 = vshll.u32 2131351028, %v563
      %v573 = vshrl.u32 2102212464, %v564
      %v574 = vor.u32 %v572, %v573
      %v575 = vshll.u32 2102212464, %v563
      %v576 = vshrl.u32 920167782, %v564
      %v577 = vor.u32 %v575, %v576
      %v578 = vshll.u32 920167782, %v563
      %v579 = vshrl.u32 1326507024, %v564
      %v580 = vor.u32 %v578, %v579
      %vm581 = vcmp.lt.s32.totalorder %v562, 1
      %vm582 = vcmp.lt.s32.totalorder %v562, 2
      %vm583 = vcmp.lt.s32.totalorder %v562, 3
      %vm584 = vcmp.lt.s32.totalorder %v562, 4
      %v585 = vsel %vm581, %v565, %v568
      %v586 = vsel %vm584, %v574, 2102212464
      %v587 = vsel %vm583, %v571, %v586
      %v588 = vsel %vm582, %v585, %v587
      %v589 = vsel %vm581, %v568, %v571
      %v590 = vsel %vm584, %v577, 920167782
      %v591 = vsel %vm583, %v574, %v590
      %v592 = vsel %vm582, %v589, %v591
      %v593 = vsel %vm581, %v571, %v574
      %v594 = vsel %vm584, %v580, 1326507024
      %v595 = vsel %vm583, %v577, %v594
      %v596 = vsel %vm582, %v593, %v595
      %v597 = vshll.u32 %v557, 8
      %v598 = vmul.u32.u64.compose %v597, %v596
      %v599 = vextract.low.u32 %v598
      %v600 = vextract.high.u32 %v598
      %v601 = vmul.u32.u64.compose %v597, %v592
      %v602 = vextract.low.u32 %v601
      %v603 = vextract.high.u32 %v601
      %v604 = vmul.u32 %v597, %v588
      %v605 = vadd.s32 %v600, %v602
      %vm606 = vc.u32 %v600, %v602
      %v607 = vadd.s32 %v603, 1
      %v608 = vsel %vm606, %v607, %v603
      %v609 = vadd.s32 %v604, %v608
      %v610 = vadd.s32 %v609, 536870912
      %v611 = vshrl.u32 %v610, 30
      %v612 = vshll.u32 %v611, 30
      %v613 = vsub.s32 %v609, %v612
      %vm614 = vcmp.lt.s32.totalorder %v613, 0
      %v615 = vsub.s32 0, %v613
      %v616 = vsel %vm614, %v615, %v613
      %v617 = vclz %v616
      %v618 = vsub.s32 %v617, 2
      %vm619 = vcmp.gt.s32.totalorder 0, %v618
      %v620 = vsel %vm619, 0, %v618
      %v621 = vsub.s32 32, %v620
      %v622 = vshll.u32 %v613, %v620
      %v623 = vshrl.u32 %v605, %v621
      %v624 = vor.u32 %v622, %v623
      %v625 = vsub.s32 4294967266, %v620
      %v626 = vadd.s32 %v625, 127
      %v627 = vshll.u32 %v626, 23
      %v628 = vor.u32 4788187, %v627
      %v629 = vand.u32 2147483647, %v628
      %v631 = vcvt.s32.f32 %v624
      %v632 = vmul.f32 %v631, %v629
      %v633 = vxor.u32 %v632, 2147483648
      %v634 = vsel %vm551, %v633, %v632
      %v635 = vsub.s32 4, %v611
      %v636 = vsel %vm551, %v635, %v611
      %v637 = vsel %vm550, %v444, %v634
      %v638 = vsel %vm550, 0, %v636
      %v639 = vcosq.f32.pop %v637
      %v640 = vsinq.f32.pop %v637
      %vm641 = vweird.f32 %v444
      %v642 = vand.u32 %v638, 3
      %vm643 = vcmp.lt.s32.totalorder %v642, 2
      %vm644 = vcmp.eq.s32.totalorder %v642, 0
      %v645 = vxor.u32 %v640, 2147483648
      %v646 = vsel %vm644, %v639, %v645
      %vm647 = vcmp.eq.s32.totalorder %v642, 2
      %v648 = vxor.u32 %v639, 2147483648
      %v649 = vsel %vm647, %v648, %v640
      %v650 = vsel %vm643, %v646, %v649
      %v651 = vsel %vm641, nan, %v650
      %v652 = vld [vmem:[%s335] sm:$0x7]
      %654 = vrot.lane.b32.xlu0 %v651, 8
      %v655 = vpop.permute.xlu0 %654
      %658 = vrot.lane.b32.xlu0 %v652, 16
      %v659 = vpop.permute.xlu0 %658
      %vm661 = vcmask 64512
      %v662 = vsel %vm661, %v548, %v655
      %vm663 = vcmask 130048
      %v664 = vsel %vm663, %v662, %v659
      %v665 = vld [vmem:[%s5 + $0x8] sm:$0xff]
      %v666 = vld [vmem:[%s5 + $0x10] sm:$0xff]
      %v667 = vld [vmem:[%s5 + $0x18] sm:$0xff]
      %v668 = vld [vmem:[%s5 + $0x20] sm:$0xff]
      %v669 = vld [vmem:[%s5 + $0x28] sm:$0x1]
      %v670 = vlaneseq
      %v671 = vshrl.u32 %v670, 7
      %v672 = vsub.s32 0, %v671
      %v673 = vrot.slane %v669, %v672
      %vm674 = vcmask 261120
      %v676 = vsel %vm674, %v664, 0
      %678 = vmatprep.subr.mxu0 0.0
      %679 = vmatpush1.msra.mxu0 %v665
      %680 = vmatprep.subr.mxu0 0.0
      %681 = vmatpush1.msra.mxu0 %v666
      %682 = vmatprep.subr.mxu0 0.0
      %683 = vmatpush1.msra.mxu0 %v667
      %684 = vmatprep.subr.mxu0 0.0
      %685 = vmatpush1.msra.mxu0 %v668
      %686 = vmatprep.subr.mxu0 0.0
      %687 = vmatpush1.msra.mxu0 0.0
      %688 = vmatprep.subr.mxu0 0.0
      %689 = vmatpush1.msra.mxu0 0.0
      %690 = vmatprep.subr.mxu0 0.0
      %691 = vmatpush1.msra.mxu0 0.0
      %692 = vmatprep.subr.mxu0 0.0
      %693 = vmatpush1.msra.mxu0 0.0
      %694 = vmatprep.subr.mxu0 0.0
      %695 = vmatpush1.msra.mxu0 0.0
      %696 = vmatprep.subr.mxu0 0.0
      %697 = vmatpush1.msra.mxu0 0.0
      %698 = vmatprep.subr.mxu0 0.0
      %699 = vmatpush1.msra.mxu0 0.0
      %700 = vmatprep.subr.mxu0 0.0
      %701 = vmatpush1.msra.mxu0 0.0
      %702 = vmatprep.subr.mxu0 0.0
      %703 = vmatpush1.msra.mxu0 0.0
      %704 = vmatprep.subr.mxu0 0.0
      %705 = vmatpush1.msra.mxu0 0.0
      %706 = vmatprep.subr.mxu0 0.0
      %707 = vmatpush1.msra.mxu0 0.0
      %708 = vmatprep.subr.mxu0 0.0
      %709 = vmatpush1.msra.mxu0 0.0
      %710 = vmatprep.subr.mxu0 0.0
      %711 = vmatpush1.msra.mxu0 0.0
      %712 = vmatprep.subr.mxu0 0.0
      %713 = vmatpush1.msra.mxu0 0.0
      %714 = vmatprep.subr.mxu0 0.0
      %715 = vmatpush1.msra.mxu0 0.0
      %716 = vmatprep.subr.mxu0 0.0
      %717 = vmatpush1.msra.mxu0 0.0
      %718 = vmatprep.subr.mxu0 0.0
      %719 = vmatpush1.msra.mxu0 0.0
      %720 = vmatprep.subr.mxu0 0.0
      %721 = vmatpush1.msra.mxu0 0.0
      %722 = vmatprep.subr.mxu0 0.0
      %723 = vmatpush1.msra.mxu0 0.0
      %724 = vmatprep.subr.mxu0 0.0
      %725 = vmatpush1.msra.mxu0 0.0
      %726 = vmatprep.subr.mxu0 0.0
      %727 = vmatpush1.msra.mxu0 0.0
      %728 = vmatprep.subr.mxu0 0.0
      %729 = vmatpush1.msra.mxu0 0.0
      %730 = vmatprep.subr.mxu0 0.0
      %731 = vmatpush1.msra.mxu0 0.0
      %732 = vmatprep.subr.mxu0 0.0
      %733 = vmatpush1.msra.mxu0 0.0
      %734 = vmatprep.subr.mxu0 0.0
      %735 = vmatpush1.msra.mxu0 0.0
      %736 = vmatprep.subr.mxu0 0.0
      %737 = vmatpush1.msra.mxu0 0.0
      %738 = vmatprep.subr.mxu0 0.0
      %739 = vmatpush1.msra.mxu0 0.0
      %740 = vmatprep.subr.mxu0 0.0
      %741 = vmatpush1.msra.mxu0 0.0
      %742 = vmatprep.mubr.f32.mxu0 0.0
      %743 = vmatmul.mubr.f32.gmra.mrb[0].mxu0 %v676
      %v744 = vpop.f32.mrb[0].mxu0
      %v745 = vadd.f32 %v673, %v744
      %v746 = vpop.f32.mrb[0].mxu0
      %747 = vdwg.mxu0
      %v748 = vlaneseq
      %v749 = vshrl.u32 %v748, 7
      %v750 = vsub.s32 0, %v749
      %v751 = vrot.slane %v745, %v750
      %v752 = vlaneseq
      %v753 = vshrl.u32 %v752, 7
      %v754 = vsub.s32 1, %v753
      %v755 = vrot.slane %v745, %v754
      %v756 = vlaneseq
      %v757 = vshrl.u32 %v756, 7
      %v758 = vsub.s32 2, %v757
      %v759 = vrot.slane %v745, %v758
      %v760 = vld [vmem:[%s5] sm:$0xf]
      %vm761 = vcmask 31744
      %v763 = vsel %vm761, %v383, 0
      %v766 = vsel %vm761, %v406, 0
      %v769 = vsel %vm761, %v429, 0
      %vm771 = vcmask 1043456
      %v773 = vsel %vm771, %v760, 0
      %775 = vmatprep.subr.mxu0 0.0
      %776 = vmatpush1.msra.mxu0 %v773
      %777 = vmatprep.subr.mxu0 0.0
      %778 = vmatpush1.msra.mxu0 0.0
      %779 = vmatprep.subr.mxu0 0.0
      %780 = vmatpush1.msra.mxu0 0.0
      %781 = vmatprep.subr.mxu0 0.0
      %782 = vmatpush1.msra.mxu0 0.0
      %783 = vmatprep.subr.mxu0 0.0
      %784 = vmatpush1.msra.mxu0 0.0
      %785 = vmatprep.subr.mxu0 0.0
      %786 = vmatpush1.msra.mxu0 0.0
      %787 = vmatprep.subr.mxu0 0.0
      %788 = vmatpush1.msra.mxu0 0.0
      %789 = vmatprep.subr.mxu0 0.0
      %790 = vmatpush1.msra.mxu0 0.0
      %791 = vmatprep.subr.mxu0 0.0
      %792 = vmatpush1.msra.mxu0 0.0
      %793 = vmatprep.subr.mxu0 0.0
      %794 = vmatpush1.msra.mxu0 0.0
      %795 = vmatprep.subr.mxu0 0.0
      %796 = vmatpush1.msra.mxu0 0.0
      %797 = vmatprep.subr.mxu0 0.0
      %798 = vmatpush1.msra.mxu0 0.0
      %799 = vmatprep.subr.mxu0 0.0
      %800 = vmatpush1.msra.mxu0 0.0
      %801 = vmatprep.subr.mxu0 0.0
      %802 = vmatpush1.msra.mxu0 0.0
      %803 = vmatprep.subr.mxu0 0.0
      %804 = vmatpush1.msra.mxu0 0.0
      %805 = vmatprep.subr.mxu0 0.0
      %806 = vmatpush1.msra.mxu0 0.0
      %807 = vmatprep.subr.mxu0 0.0
      %808 = vmatpush1.msra.mxu0 0.0
      %809 = vmatprep.subr.mxu0 0.0
      %810 = vmatpush1.msra.mxu0 0.0
      %811 = vmatprep.subr.mxu0 0.0
      %812 = vmatpush1.msra.mxu0 0.0
      %813 = vmatprep.subr.mxu0 0.0
      %814 = vmatpush1.msra.mxu0 0.0
      %815 = vmatprep.subr.mxu0 0.0
      %816 = vmatpush1.msra.mxu0 0.0
      %817 = vmatprep.subr.mxu0 0.0
      %818 = vmatpush1.msra.mxu0 0.0
      %819 = vmatprep.subr.mxu0 0.0
      %820 = vmatpush1.msra.mxu0 0.0
      %821 = vmatprep.subr.mxu0 0.0
      %822 = vmatpush1.msra.mxu0 0.0
      %823 = vmatprep.subr.mxu0 0.0
      %824 = vmatpush1.msra.mxu0 0.0
      %825 = vmatprep.subr.mxu0 0.0
      %826 = vmatpush1.msra.mxu0 0.0
      %827 = vmatprep.subr.mxu0 0.0
      %828 = vmatpush1.msra.mxu0 0.0
      %829 = vmatprep.subr.mxu0 0.0
      %830 = vmatpush1.msra.mxu0 0.0
      %831 = vmatprep.subr.mxu0 0.0
      %832 = vmatpush1.msra.mxu0 0.0
      %833 = vmatprep.subr.mxu0 0.0
      %834 = vmatpush1.msra.mxu0 0.0
      %835 = vmatprep.subr.mxu0 0.0
      %836 = vmatpush1.msra.mxu0 0.0
      %837 = vmatprep.subr.mxu0 0.0
      %838 = vmatpush1.msra.mxu0 0.0
      %839 = vmatprep.mubr.f32.mxu0 0.0
      %840 = vmatmul.mubr.f32.gmra.mrb[0].mxu0 %v763
      %v841 = vpop.f32.mrb[0].mxu0
      %v842 = vadd.f32 %v751, %v841
      %v843 = vpop.f32.mrb[0].mxu0
      %844 = vmatprep.mubr.f32.mxu0 0.0
      %845 = vmatmul.mubr.f32.gmra.mrb[0].mxu0 %v766
      %v846 = vpop.f32.mrb[0].mxu0
      %v847 = vadd.f32 %v755, %v846
      %v848 = vpop.f32.mrb[0].mxu0
      %849 = vmatprep.mubr.f32.mxu0 0.0
      %850 = vmatmul.mubr.f32.gmra.mrb[0].mxu0 %v769
      %v851 = vpop.f32.mrb[0].mxu0
      %v852 = vadd.f32 %v759, %v851
      %v853 = vpop.f32.mrb[0].mxu0
      %854 = vdwg.mxu0
      %v855 = vmax.f32 %v842, 0.0
      %v856 = vmax.f32 %v847, 0.0
      %v857 = vmax.f32 %v852, 0.0
      %v858 = vld [vmem:[%s5 + $0x30] sm:$0xff]
      %v859 = vld [vmem:[%s5 + $0x38] sm:$0xff]
      %v860 = vld [vmem:[%s5 + $0x40] sm:$0xff]
      %v861 = vld [vmem:[%s5 + $0x48] sm:$0xff]
      %v862 = vld [vmem:[%s5 + $0x50] sm:$0x1]
      %v863 = vlaneseq
      %v864 = vshrl.u32 %v863, 7
      %v865 = vsub.s32 0, %v864
      %v866 = vrot.slane %v862, %v865
      %v868 = vsel %vm674, %v855, 0
      %v871 = vsel %vm674, %v856, 0
      %v874 = vsel %vm674, %v857, 0
      %876 = vmatprep.subr.mxu0 0.0
      %877 = vmatpush1.msra.mxu0 %v858
      %878 = vmatprep.subr.mxu0 0.0
      %879 = vmatpush1.msra.mxu0 %v859
      %880 = vmatprep.subr.mxu0 0.0
      %881 = vmatpush1.msra.mxu0 %v860
      %882 = vmatprep.subr.mxu0 0.0
      %883 = vmatpush1.msra.mxu0 %v861
      %884 = vmatprep.subr.mxu0 0.0
      %885 = vmatpush1.msra.mxu0 0.0
      %886 = vmatprep.subr.mxu0 0.0
      %887 = vmatpush1.msra.mxu0 0.0
      %888 = vmatprep.subr.mxu0 0.0
      %889 = vmatpush1.msra.mxu0 0.0
      %890 = vmatprep.subr.mxu0 0.0
      %891 = vmatpush1.msra.mxu0 0.0
      %892 = vmatprep.subr.mxu0 0.0
      %893 = vmatpush1.msra.mxu0 0.0
      %894 = vmatprep.subr.mxu0 0.0
      %895 = vmatpush1.msra.mxu0 0.0
      %896 = vmatprep.subr.mxu0 0.0
      %897 = vmatpush1.msra.mxu0 0.0
      %898 = vmatprep.subr.mxu0 0.0
      %899 = vmatpush1.msra.mxu0 0.0
      %900 = vmatprep.subr.mxu0 0.0
      %901 = vmatpush1.msra.mxu0 0.0
      %902 = vmatprep.subr.mxu0 0.0
      %903 = vmatpush1.msra.mxu0 0.0
      %904 = vmatprep.subr.mxu0 0.0
      %905 = vmatpush1.msra.mxu0 0.0
      %906 = vmatprep.subr.mxu0 0.0
      %907 = vmatpush1.msra.mxu0 0.0
      %908 = vmatprep.subr.mxu0 0.0
      %909 = vmatpush1.msra.mxu0 0.0
      %910 = vmatprep.subr.mxu0 0.0
      %911 = vmatpush1.msra.mxu0 0.0
      %912 = vmatprep.subr.mxu0 0.0
      %913 = vmatpush1.msra.mxu0 0.0
      %914 = vmatprep.subr.mxu0 0.0
      %915 = vmatpush1.msra.mxu0 0.0
      %916 = vmatprep.subr.mxu0 0.0
      %917 = vmatpush1.msra.mxu0 0.0
      %918 = vmatprep.subr.mxu0 0.0
      %919 = vmatpush1.msra.mxu0 0.0
      %920 = vmatprep.subr.mxu0 0.0
      %921 = vmatpush1.msra.mxu0 0.0
      %922 = vmatprep.subr.mxu0 0.0
      %923 = vmatpush1.msra.mxu0 0.0
      %924 = vmatprep.subr.mxu0 0.0
      %925 = vmatpush1.msra.mxu0 0.0
      %926 = vmatprep.subr.mxu0 0.0
      %927 = vmatpush1.msra.mxu0 0.0
      %928 = vmatprep.subr.mxu0 0.0
      %929 = vmatpush1.msra.mxu0 0.0
      %930 = vmatprep.subr.mxu0 0.0
      %931 = vmatpush1.msra.mxu0 0.0
      %932 = vmatprep.subr.mxu0 0.0
      %933 = vmatpush1.msra.mxu0 0.0
      %934 = vmatprep.subr.mxu0 0.0
      %935 = vmatpush1.msra.mxu0 0.0
      %936 = vmatprep.subr.mxu0 0.0
      %937 = vmatpush1.msra.mxu0 0.0
      %938 = vmatprep.subr.mxu0 0.0
      %939 = vmatpush1.msra.mxu0 0.0
      %940 = vmatprep.mubr.f32.mxu0 0.0
      %941 = vmatmul.mubr.f32.gmra.mrb[0].mxu0 %v868
      %v942 = vpop.f32.mrb[0].mxu0
      %v943 = vadd.f32 %v866, %v942
      %v944 = vpop.f32.mrb[0].mxu0
      %945 = vmatprep.mubr.f32.mxu0 0.0
      %946 = vmatmul.mubr.f32.gmra.mrb[0].mxu0 %v871
      %v947 = vpop.f32.mrb[0].mxu0
      %v948 = vadd.f32 %v866, %v947
      %v949 = vpop.f32.mrb[0].mxu0
      %950 = vmatprep.mubr.f32.mxu0 0.0
      %951 = vmatmul.mubr.f32.gmra.mrb[0].mxu0 %v874
      %v952 = vpop.f32.mrb[0].mxu0
      %v953 = vadd.f32 %v866, %v952
      %v954 = vpop.f32.mrb[0].mxu0
      %955 = vdwg.mxu0
      %v956 = vmax.f32 %v943, 0.0
      %v957 = vmax.f32 %v948, 0.0
      %v958 = vmax.f32 %v953, 0.0
      %v959 = vld [vmem:[%s6] sm:$0xff]
      %v960 = vld [vmem:[%s6 + $0x8] sm:$0xff]
      %v961 = vld [vmem:[%s6 + $0x10] sm:$0xff]
      %v962 = vld [vmem:[%s6 + $0x18] sm:$0xff]
      %v963 = vld [vmem:[%s6 + $0x20] sm:$0x1]
      %v964 = vlaneseq
      %v965 = vshrl.u32 %v964, 7
      %v966 = vsub.s32 0, %v965
      %v967 = vrot.slane %v963, %v966
      %v969 = vsel %vm674, %v956, 0
      %v972 = vsel %vm674, %v957, 0
      %v975 = vsel %vm674, %v958, 0
      %977 = vmatprep.subr.mxu0 0.0
      %978 = vmatpush1.msra.mxu0 %v959
      %979 = vmatprep.subr.mxu0 0.0
      %980 = vmatpush1.msra.mxu0 %v960
      %981 = vmatprep.subr.mxu0 0.0
      %982 = vmatpush1.msra.mxu0 %v961
      %983 = vmatprep.subr.mxu0 0.0
      %984 = vmatpush1.msra.mxu0 %v962
      %985 = vmatprep.subr.mxu0 0.0
      %986 = vmatpush1.msra.mxu0 0.0
      %987 = vmatprep.subr.mxu0 0.0
      %988 = vmatpush1.msra.mxu0 0.0
      %989 = vmatprep.subr.mxu0 0.0
      %990 = vmatpush1.msra.mxu0 0.0
      %991 = vmatprep.subr.mxu0 0.0
      %992 = vmatpush1.msra.mxu0 0.0
      %993 = vmatprep.subr.mxu0 0.0
      %994 = vmatpush1.msra.mxu0 0.0
      %995 = vmatprep.subr.mxu0 0.0
      %996 = vmatpush1.msra.mxu0 0.0
      %997 = vmatprep.subr.mxu0 0.0
      %998 = vmatpush1.msra.mxu0 0.0
      %999 = vmatprep.subr.mxu0 0.0
      %1000 = vmatpush1.msra.mxu0 0.0
      %1001 = vmatprep.subr.mxu0 0.0
      %1002 = vmatpush1.msra.mxu0 0.0
      %1003 = vmatprep.subr.mxu0 0.0
      %1004 = vmatpush1.msra.mxu0 0.0
      %1005 = vmatprep.subr.mxu0 0.0
      %1006 = vmatpush1.msra.mxu0 0.0
      %1007 = vmatprep.subr.mxu0 0.0
      %1008 = vmatpush1.msra.mxu0 0.0
      %1009 = vmatprep.subr.mxu0 0.0
      %1010 = vmatpush1.msra.mxu0 0.0
      %1011 = vmatprep.subr.mxu0 0.0
      %1012 = vmatpush1.msra.mxu0 0.0
      %1013 = vmatprep.subr.mxu0 0.0
      %1014 = vmatpush1.msra.mxu0 0.0
      %1015 = vmatprep.subr.mxu0 0.0
      %1016 = vmatpush1.msra.mxu0 0.0
      %1017 = vmatprep.subr.mxu0 0.0
      %1018 = vmatpush1.msra.mxu0 0.0
      %1019 = vmatprep.subr.mxu0 0.0
      %1020 = vmatpush1.msra.mxu0 0.0
      %1021 = vmatprep.subr.mxu0 0.0
      %1022 = vmatpush1.msra.mxu0 0.0
      %1023 = vmatprep.subr.mxu0 0.0
      %1024 = vmatpush1.msra.mxu0 0.0
      %1025 = vmatprep.subr.mxu0 0.0
      %1026 = vmatpush1.msra.mxu0 0.0
      %1027 = vmatprep.subr.mxu0 0.0
      %1028 = vmatpush1.msra.mxu0 0.0
      %1029 = vmatprep.subr.mxu0 0.0
      %1030 = vmatpush1.msra.mxu0 0.0
      %1031 = vmatprep.subr.mxu0 0.0
      %1032 = vmatpush1.msra.mxu0 0.0
      %1033 = vmatprep.subr.mxu0 0.0
      %1034 = vmatpush1.msra.mxu0 0.0
      %1035 = vmatprep.subr.mxu0 0.0
      %1036 = vmatpush1.msra.mxu0 0.0
      %1037 = vmatprep.subr.mxu0 0.0
      %1038 = vmatpush1.msra.mxu0 0.0
      %1039 = vmatprep.subr.mxu0 0.0
      %1040 = vmatpush1.msra.mxu0 0.0
      %1041 = vmatprep.mubr.f32.mxu0 0.0
      %1042 = vmatmul.mubr.f32.gmra.mrb[0].mxu0 %v969
      %v1043 = vpop.f32.mrb[0].mxu0
      %v1044 = vadd.f32 %v967, %v1043
      %v1045 = vpop.f32.mrb[0].mxu0
      %1046 = vmatprep.mubr.f32.mxu0 0.0
      %1047 = vmatmul.mubr.f32.gmra.mrb[0].mxu0 %v972
      %v1048 = vpop.f32.mrb[0].mxu0
      %v1049 = vadd.f32 %v967, %v1048
      %v1050 = vpop.f32.mrb[0].mxu0
      %1051 = vmatprep.mubr.f32.mxu0 0.0
      %1052 = vmatmul.mubr.f32.gmra.mrb[0].mxu0 %v975
      %v1053 = vpop.f32.mrb[0].mxu0
      %v1054 = vadd.f32 %v967, %v1053
      %v1055 = vpop.f32.mrb[0].mxu0
      %1056 = vdwg.mxu0
      %v1057 = vlaneseq
      %v1058 = vand.u32 %v1057, 127
      %v1059 = vlaneseq
      %v1060 = vshrl.u32 %v1059, 7
      %v1061 = vmul.u32 %v1060, 8
      %v1062 = vsub.s32 %v1058, %v1061
      %vm1063 = vcmp.ge.s32.totalorder %v1062, 0
      %vm1064 = vcmp.lt.s32.totalorder %v1062, 8
      %vm1065 = vmand %vm1063, %vm1064
      %1067 = vrot.lane.b32.xlu0 %v1044, 8
      %v1068 = vpop.permute.xlu0 %1067
      %1070 = vrot.lane.b32.xlu0 %v1044, 16
      %v1071 = vpop.permute.xlu0 %1070
      %1073 = vrot.lane.b32.xlu0 %v1044, 24
      %v1074 = vpop.permute.xlu0 %1073
      %1076 = vrot.lane.b32.xlu0 %v1044, 32
      %v1077 = vpop.permute.xlu0 %1076
      %1079 = vrot.lane.b32.xlu0 %v1044, 40
      %v1080 = vpop.permute.xlu0 %1079
      %1082 = vrot.lane.b32.xlu0 %v1044, 48
      %v1083 = vpop.permute.xlu0 %1082
      %1085 = vrot.lane.b32.xlu0 %v1044, 56
      %v1086 = vpop.permute.xlu0 %1085
      %v1088 = vsel %vm661, %v1044, %v1068
      %v1089 = vsel %vm663, %v1088, %v1071
      %vm1090 = vcmask 195584
      %v1091 = vsel %vm1090, %v1089, %v1074
      %v1092 = vsel %vm674, %v1091, %v1077
      %vm1093 = vcmask 326656
      %v1094 = vsel %vm1093, %v1092, %v1080
      %vm1095 = vcmask 392192
      %v1096 = vsel %vm1095, %v1094, %v1083
      %vm1097 = vcmask 457728
      %v1098 = vsel %vm1097, %v1096, %v1086
      %v1099 = vsel %vm1065, %v1098, 0.0
      %vm1100 = vcmask 523264
      %v1101 = vsel %vm1100, %v1099, 0.0
      %v1102 = vrot.slane %v1101, 4
      %v1103 = vadd.f32 %v1101, %v1102
      %v1104 = vrot.slane %v1103, 2
      %v1105 = vadd.f32 %v1103, %v1104
      %v1106 = vrot.slane %v1105, 1
      %v1107 = vadd.f32 %v1105, %v1106
      %1109 = vrot.lane.b32.xlu0 %v1049, 8
      %v1110 = vpop.permute.xlu0 %1109
      %1112 = vrot.lane.b32.xlu0 %v1049, 16
      %v1113 = vpop.permute.xlu0 %1112
      %1115 = vrot.lane.b32.xlu0 %v1049, 24
      %v1116 = vpop.permute.xlu0 %1115
      %1118 = vrot.lane.b32.xlu0 %v1049, 32
      %v1119 = vpop.permute.xlu0 %1118
      %1121 = vrot.lane.b32.xlu0 %v1049, 40
      %v1122 = vpop.permute.xlu0 %1121
      %1124 = vrot.lane.b32.xlu0 %v1049, 48
      %v1125 = vpop.permute.xlu0 %1124
      %1127 = vrot.lane.b32.xlu0 %v1049, 56
      %v1128 = vpop.permute.xlu0 %1127
      %v1130 = vsel %vm661, %v1049, %v1110
      %v1131 = vsel %vm663, %v1130, %v1113
      %v1132 = vsel %vm1090, %v1131, %v1116
      %v1133 = vsel %vm674, %v1132, %v1119
      %v1134 = vsel %vm1093, %v1133, %v1122
      %v1135 = vsel %vm1095, %v1134, %v1125
      %v1136 = vsel %vm1097, %v1135, %v1128
      %v1137 = vsel %vm1065, %v1136, 0.0
      %v1138 = vsel %vm1100, %v1137, 0.0
      %v1139 = vrot.slane %v1138, 4
      %v1140 = vadd.f32 %v1138, %v1139
      %v1141 = vrot.slane %v1140, 2
      %v1142 = vadd.f32 %v1140, %v1141
      %v1143 = vrot.slane %v1142, 1
      %v1144 = vadd.f32 %v1142, %v1143
      %1146 = vrot.lane.b32.xlu0 %v1054, 8
      %v1147 = vpop.permute.xlu0 %1146
      %1149 = vrot.lane.b32.xlu0 %v1054, 16
      %v1150 = vpop.permute.xlu0 %1149
      %1152 = vrot.lane.b32.xlu0 %v1054, 24
      %v1153 = vpop.permute.xlu0 %1152
      %1155 = vrot.lane.b32.xlu0 %v1054, 32
      %v1156 = vpop.permute.xlu0 %1155
      %1158 = vrot.lane.b32.xlu0 %v1054, 40
      %v1159 = vpop.permute.xlu0 %1158
      %1161 = vrot.lane.b32.xlu0 %v1054, 48
      %v1162 = vpop.permute.xlu0 %1161
      %1164 = vrot.lane.b32.xlu0 %v1054, 56
      %v1165 = vpop.permute.xlu0 %1164
      %v1167 = vsel %vm661, %v1054, %v1147
      %v1168 = vsel %vm663, %v1167, %v1150
      %v1169 = vsel %vm1090, %v1168, %v1153
      %v1170 = vsel %vm674, %v1169, %v1156
      %v1171 = vsel %vm1093, %v1170, %v1159
      %v1172 = vsel %vm1095, %v1171, %v1162
      %v1173 = vsel %vm1097, %v1172, %v1165
      %v1174 = vsel %vm1065, %v1173, 0.0
      %v1175 = vsel %vm1100, %v1174, 0.0
      %v1176 = vrot.slane %v1175, 4
      %v1177 = vadd.f32 %v1175, %v1176
      %v1178 = vrot.slane %v1177, 2
      %v1179 = vadd.f32 %v1177, %v1178
      %v1180 = vrot.slane %v1179, 1
      %v1181 = vadd.f32 %v1179, %v1180
      %vm1182 = vcmask 1040384
      %v1183 = vsel %vm1182, %v1107, %v1144
      %vm1184 = vcmask 1041408
      %v1185 = vsel %vm1184, %v1183, %v1181
      %v1186 = vld [vmem:[%s7] sm:$0xff]
      %v1187 = vld [vmem:[%s7 + $0x8] sm:$0xff]
      %v1188 = vld [vmem:[%s7 + $0x10] sm:$0xff]
      %v1189 = vld [vmem:[%s7 + $0x18] sm:$0xff]
      %v1190 = vld [vmem:[%s7 + $0x20] sm:$0xff]
      %v1191 = vld [vmem:[%s7 + $0x28] sm:$0xff]
      %v1192 = vld [vmem:[%s7 + $0x30] sm:$0xff]
      %v1193 = vld [vmem:[%s7 + $0x38] sm:$0xff]
      %v1194 = vld [vmem:[%s7 + $0x40] sm:$0x1]
      %v1195 = vlaneseq
      %v1196 = vshrl.u32 %v1195, 7
      %v1197 = vsub.s32 0, %v1196
      %v1198 = vrot.slane %v1194, %v1197
      %v1200 = vsel %vm1100, %v1185, 0
      %1202 = vmatprep.subr.mxu0 0.0
      %1203 = vmatpush1.msra.mxu0 %v1186
      %1204 = vmatprep.subr.mxu0 0.0
      %1205 = vmatpush1.msra.mxu0 %v1187
      %1206 = vmatprep.subr.mxu0 0.0
      %1207 = vmatpush1.msra.mxu0 %v1188
      %1208 = vmatprep.subr.mxu0 0.0
      %1209 = vmatpush1.msra.mxu0 %v1189
      %1210 = vmatprep.subr.mxu0 0.0
      %1211 = vmatpush1.msra.mxu0 %v1190
      %1212 = vmatprep.subr.mxu0 0.0
      %1213 = vmatpush1.msra.mxu0 %v1191
      %1214 = vmatprep.subr.mxu0 0.0
      %1215 = vmatpush1.msra.mxu0 %v1192
      %1216 = vmatprep.subr.mxu0 0.0
      %1217 = vmatpush1.msra.mxu0 %v1193
      %1218 = vmatprep.subr.mxu0 0.0
      %1219 = vmatpush1.msra.mxu0 0.0
      %1220 = vmatprep.subr.mxu0 0.0
      %1221 = vmatpush1.msra.mxu0 0.0
      %1222 = vmatprep.subr.mxu0 0.0
      %1223 = vmatpush1.msra.mxu0 0.0
      %1224 = vmatprep.subr.mxu0 0.0
      %1225 = vmatpush1.msra.mxu0 0.0
      %1226 = vmatprep.subr.mxu0 0.0
      %1227 = vmatpush1.msra.mxu0 0.0
      %1228 = vmatprep.subr.mxu0 0.0
      %1229 = vmatpush1.msra.mxu0 0.0
      %1230 = vmatprep.subr.mxu0 0.0
      %1231 = vmatpush1.msra.mxu0 0.0
      %1232 = vmatprep.subr.mxu0 0.0
      %1233 = vmatpush1.msra.mxu0 0.0
      %1234 = vmatprep.subr.mxu0 0.0
      %1235 = vmatpush1.msra.mxu0 0.0
      %1236 = vmatprep.subr.mxu0 0.0
      %1237 = vmatpush1.msra.mxu0 0.0
      %1238 = vmatprep.subr.mxu0 0.0
      %1239 = vmatpush1.msra.mxu0 0.0
      %1240 = vmatprep.subr.mxu0 0.0
      %1241 = vmatpush1.msra.mxu0 0.0
      %1242 = vmatprep.subr.mxu0 0.0
      %1243 = vmatpush1.msra.mxu0 0.0
      %1244 = vmatprep.subr.mxu0 0.0
      %1245 = vmatpush1.msra.mxu0 0.0
      %1246 = vmatprep.subr.mxu0 0.0
      %1247 = vmatpush1.msra.mxu0 0.0
      %1248 = vmatprep.subr.mxu0 0.0
      %1249 = vmatpush1.msra.mxu0 0.0
      %1250 = vmatprep.subr.mxu0 0.0
      %1251 = vmatpush1.msra.mxu0 0.0
      %1252 = vmatprep.subr.mxu0 0.0
      %1253 = vmatpush1.msra.mxu0 0.0
      %1254 = vmatprep.subr.mxu0 0.0
      %1255 = vmatpush1.msra.mxu0 0.0
      %1256 = vmatprep.subr.mxu0 0.0
      %1257 = vmatpush1.msra.mxu0 0.0
      %1258 = vmatprep.subr.mxu0 0.0
      %1259 = vmatpush1.msra.mxu0 0.0
      %1260 = vmatprep.subr.mxu0 0.0
      %1261 = vmatpush1.msra.mxu0 0.0
      %1262 = vmatprep.subr.mxu0 0.0
      %1263 = vmatpush1.msra.mxu0 0.0
      %1264 = vmatprep.subr.mxu0 0.0
      %1265 = vmatpush1.msra.mxu0 0.0
      %1266 = vmatprep.mubr.f32.mxu0 0.0
      %1267 = vmatmul.mubr.f32.gmra.mrb[0].mxu0 %v1200
      %v1268 = vpop.f32.mrb[0].mxu0
      %v1269 = vadd.f32 %v1198, %v1268
      %v1270 = vpop.f32.mrb[0].mxu0
      %1271 = vdwg.mxu0
      %v1272 = vmax.f32 %v1269, 0.0
      %v1273 = vld [vmem:[%s7 + $0x48] sm:$0x1]
      %v1274 = vld [vmem:[%s7 + $0x50] sm:$0x1]
      %v1275 = vlaneseq
      %v1276 = vshrl.u32 %v1275, 7
      %v1277 = vsub.s32 0, %v1276
      %v1278 = vrot.slane %v1273, %v1277
      %v1279 = vmul.f32 %v1272, %v1278
      %vm1280 = vcmask 256000
      %v1281 = vsel %vm1280, %v1279, 0.0
      %1282 = vadd.xlane.f32.xlu0 %v1281
      %v1283 = vpop.xlane.xlu0 %1282
      %v1284 = vlaneseq
      %v1285 = vshrl.u32 %v1284, 7
      %v1286 = vsub.s32 0, %v1285
      %v1287 = vrot.slane %v1274, %v1286
      %v1288 = vadd.f32 %v1283, %v1287
      %vm1289 = vcmask 2048
      %1290 = vst.msk [vmem:[%s339] sm:$0x7] %vm1289, %v1288
      %p1291 = scmp.lt.s32.totalorder %s19, 1
      %s1292 = scalar_select %p1291, %s19, 1
      %s1293 = smul.addr %s1292, 4
      %s1294 = scalar_lea.vmem %s8, %s1293
      // Predicated region
      $region53: #{tpu_custom_call.1} parent=51 // pred_check
        %p1295 = pneg %p220
      $region54: #{tpu_custom_call.1} parent=51 // pred_check_branch
        %1297 = sbr.rel (%p1295) target = $region56
      $region55: #{tpu_custom_call.1} parent=51 // pred_region
        _
      $region56: #{tpu_custom_call.1} parent=51 // pred_fallthru
        _
    $region52: #{tpu_custom_call.1} parent=5 // pred_fallthru
      _
    %p1298 = scmp.le.s32.totalorder 2, %s14
    // Predicated region
    $region57: #{tpu_custom_call.1} parent=5 // pred_check
      %p1299 = pneg %p1298
    $region58: #{tpu_custom_call.1} parent=5 // pred_check_branch
      %1301 = sbr.rel (%p1299) target = $region60
    $region59: #{tpu_custom_call.1} parent=5 // pred_region
      %s1302 = ssub.s32 %s14, 2
      // Predicated region
      $region61: #{tpu_custom_call.1} parent=59 // pred_check
        %p1303 = pneg %p226
      $region62: #{tpu_custom_call.1} parent=59 // pred_check_branch
        %1305 = sbr.rel (%p1303) target = $region64
      $region63: #{tpu_custom_call.1} parent=59 // pred_region
        %p1306 = scmp.lt.s32.totalorder %s20, 1
        %s1307 = scalar_select %p1306, %s20, 1
        %s1308 = smul.addr %s1307, 4
        %s1309 = scalar_lea.vmem %s8, %s1308
      $region64: #{tpu_custom_call.1} parent=59 // pred_fallthru
        _
    $region60: #{tpu_custom_call.1} parent=5 // pred_fallthru
      _
  $region6: #{tpu_custom_call.1} parent=0 // loop_footer
    %s18 = sadd.s32 1, %s14
  $region7: #{tpu_custom_call.1} parent=0 // loop_footer_branch
    %13 = sbr.rel target = $region3
  $region8: #{tpu_custom_call.1} parent=0 // loop_exit
    _

</llo_original>
